<compile_context>
chip_gen: v6e
topology: v6e:2x2x1
jax: 0.10.0
libtpu: 0.0.40
codegen_flags: <defaults>
</compile_context>

<pallas_src>
import functools

import jax
import jax.numpy as jnp
from jax.experimental import pallas as pl
from jax.experimental.pallas import tpu as pltpu

_NEG_LARGE = -1e30        # masks padded logit columns (exp underflows to exactly 0)
_BATCH_TILE_MAX = 512     # per-grid-step overhead ~0.35us; bf16 matmul makes tiles cheap
_LANE = 128
_SUBLANE = 8


def _round_up(x, m):
    return ((x + m - 1) // m) * m


# ---------------------------------------------------------------------------
# Kernels
# ---------------------------------------------------------------------------

def _masked_softmax_head(h_f32, wo_ref, bo_ref, o_ref):
    """Final Linear (bf16 MXU operands, f32 accumulate) + stable softmax over lanes."""
    logits = jnp.dot(h_f32.astype(jnp.bfloat16), wo_ref[...],
                     preferred_element_type=jnp.float32) + bo_ref[...]
    m = jnp.max(logits, axis=1, keepdims=True)
    e = jnp.exp(logits - m)                    # padded cols: exp(-1e30 - m) == 0
    s = jnp.sum(e, axis=1, keepdims=True)
    # Exact division (NOT approx reciprocal) so every row sums to 1 to f32 precision.
    o_ref[...] = (e / s).astype(o_ref.dtype)


def _mlp_softmax_kernel(x_ref, wh_ref, bh_ref, wo_ref, bo_ref, o_ref,
                        *, num_hidden_layers):
    """One batch tile through the whole network; all weights resident in VMEM."""
    h = x_ref[...].astype(jnp.float32)
    for l in range(num_hidden_layers):         # statically unrolled hidden stack
        h = jnp.dot(h.astype(jnp.bfloat16), wh_ref[l],
                    preferred_element_type=jnp.float32)
        h = jnp.maximum(h + bh_ref[l], 0.0)
    _masked_softmax_head(h, wo_ref, bo_ref, o_ref)


def _linear_softmax_kernel(x_ref, wo_ref, bo_ref, o_ref):
    """num_hidden_layers == 0 path: no dummy hidden-weight stack is passed or DMA'd."""
    _masked_softmax_head(x_ref[...].astype(jnp.float32), wo_ref, bo_ref, o_ref)


# ---------------------------------------------------------------------------
# Fused forward
# ---------------------------------------------------------------------------

def _fused_forward(x_flat, wh, bh, wo_pad, bo_pad, *, num_hidden_layers,
                   output_size, single_buffer_weights):
    B, D = x_flat.shape
    NP = wo_pad.shape[1]
    L = num_hidden_layers

    # Sublane-align the batch only (at most 7 extra rows); the grid uses cdiv, so we
    # never materialize a full pad up to a tile multiple in HBM.
    Bp = _round_up(B, _SUBLANE)
    if Bp != B:
        x_flat = jnp.pad(x_flat, ((0, Bp - B), (0, 0)))

    # At least 2 batch tiles whenever Bp >= 16 so both v7x TensorCores get work.
    TB = min(_BATCH_TILE_MAX, max(_SUBLANE, _round_up(pl.cdiv(Bp, 2), _SUBLANE)))
    grid = (pl.cdiv(Bp, TB),)

    # Weights/biases are grid-invariant (constant index_map); single-buffer them to
    # halve their VMEM footprint when the backend supports pipeline_mode.
    def _resident(shape, index_map):
        if single_buffer_weights:
            return pl.BlockSpec(shape, index_map, pipeline_mode=pl.Buffered(1))
        return pl.BlockSpec(shape, index_map)

    in_specs = [pl.BlockSpec((TB, D), lambda i: (i, 0))]      # activations stream
    operands = [x_flat]
    if L > 0:
        in_specs += [_resident((L, D, D), lambda i: (0, 0, 0)),
                     _resident((L, 1, D), lambda i: (0, 0, 0))]
        operands += [wh, bh]
        kernel = functools.partial(_mlp_softmax_kernel, num_hidden_layers=L)
    else:
        kernel = _linear_softmax_kernel
    in_specs += [_resident((D, NP), lambda i: (0, 0)),
                 _resident((1, NP), lambda i: (0, 0))]
    operands += [wo_pad, bo_pad]

    # Explicit scoped-VMEM budget from the actual footprint (+4 MiB headroom), clamped
    # to a range every generation can grant (v5e default 16 MiB, v7x physical 64 MiB).
    weight_bytes = (L * D * D + D * NP) * 2 + (L * D + NP) * 4      # bf16 W, f32 b
    act_bytes = 2 * TB * D * 4 + 2 * TB * NP * 4                    # double-buffered tiles
    buf_mult = 1 if single_buffer_weights else 2
    vmem_limit = int(min(max(buf_mult * weight_bytes + act_bytes + (4 << 20),
                             16 << 20), 64 << 20))
    # TODO(synk): stream the hidden weight stack (pltpu.emit_pipeline over layers) once
    # L*D*D*2 bytes exceeds ~24 MiB so the kernel survives v7x's 64 MiB VMEM per TC.

    flops = 2 * Bp * D * D * L + 2 * Bp * D * NP
    bytes_accessed = Bp * D * 4 + weight_bytes + Bp * NP * 4

    out = pl.pallas_call(
        kernel,
        out_shape=jax.ShapeDtypeStruct((Bp, NP), jnp.float32),
        grid_spec=pltpu.PrefetchScalarGridSpec(
            num_scalar_prefetch=0,
            grid=grid,
            in_specs=in_specs,
            out_specs=pl.BlockSpec((TB, NP), lambda i: (i, 0)),   # lane-dense output
        ),
        compiler_params=pltpu.CompilerParams(
            dimension_semantics=("parallel",),                    # batch tiles independent
            vmem_limit_bytes=vmem_limit,
        ),
        cost_estimate=pl.CostEstimate(
            flops=flops,
            transcendentals=Bp * NP,
            bytes_accessed=bytes_accessed,
        ),
    )(*operands)

    return out[:B, :output_size]


_fused_forward_jit = jax.jit(
    _fused_forward,
    static_argnames=("num_hidden_layers", "output_size", "single_buffer_weights"))


# ---------------------------------------------------------------------------
# Module wrapper
# ---------------------------------------------------------------------------

class FullyConnectedNetworkSoftmaxPallas:
    """JAX/Pallas equivalent of the PyTorch module (forward pass only)."""

    def __init__(self, input_size, num_hidden_layers, output_size, key):
        D = input_size
        self.input_size = D
        self.num_hidden_layers = num_hidden_layers
        self.output_size = output_size
        bound = 1.0 / (D ** 0.5)

        # PyTorch Linear weight is (out, in); store pre-transposed (in, out).
        # Weights in bf16 (MXU-native operands); biases and softmax math stay f32.
        wh, bh = [], []
        for _ in range(num_hidden_layers):
            key, kw, kb = jax.random.split(key, 3)
            wh.append(jax.random.uniform(kw, (D, D), jnp.float32, -bound, bound)
                      .astype(jnp.bfloat16))
            bh.append(jax.random.uniform(kb, (1, D), jnp.float32, -bound, bound))
        if num_hidden_layers > 0:
            self.wh = jnp.stack(wh)                 # (L, D, D) bf16
            self.bh = jnp.stack(bh)                 # (L, 1, D) f32
        else:
            self.wh = None                          # no dummy stack is ever DMA'd
            self.bh = None

        key, kw, kb = jax.random.split(key, 3)
        self.wo_t = (jax.random.uniform(kw, (D, output_size), jnp.float32, -bound, bound)
                     .astype(jnp.bfloat16))          # (D, out) bf16
        self.bo = jax.random.uniform(kb, (1, output_size), jnp.float32, -bound, bound)
        NP = _round_up(output_size, _LANE)
        self.wo_pad = jnp.pad(self.wo_t, ((0, 0), (0, NP - output_size)))      # zeros
        self.bo_pad = jnp.pad(self.bo, ((0, 0), (0, NP - output_size)),
                              constant_values=_NEG_LARGE)                       # f32 mask

        self._single_buffer = None   # decided (and cached) on first call

    def _forward(self, x_flat, single_buffer):
        return _fused_forward_jit(
            x_flat, self.wh, self.bh, self.wo_pad, self.bo_pad,
            num_hidden_layers=self.num_hidden_layers,
            output_size=self.output_size,
            single_buffer_weights=single_buffer)

    def __call__(self, x):
        x_flat = x.reshape(x.shape[0], -1).astype(jnp.float32)   # flatten(1)
        if self._single_buffer is None:
            try:
                out = self._forward(x_flat, True)
                jax.block_until_ready(out)
                self._single_buffer = True
                return out
            except Exception:
                # pipeline_mode=pl.Buffered(1) not supported on this jax/backend;
                # fall back to default (double-buffered) weight BlockSpecs.
                self._single_buffer = False
        return self._forward(x_flat, self._single_buffer)


# ---------------------------------------------------------------------------
# Reference (mirrors the kernel's bf16-operand / f32-accumulate math)
# ---------------------------------------------------------------------------

def _reference_forward(model, x):
    h = x.reshape(x.shape[0], -1).astype(jnp.float32)
    for l in range(model.num_hidden_layers):
        h = jnp.dot(h.astype(jnp.bfloat16), model.wh[l],
                    preferred_element_type=jnp.float32) + model.bh[l]
        h = jnp.maximum(h, 0.0)
    logits = jnp.dot(h.astype(jnp.bfloat16), model.wo_t,
                     preferred_element_type=jnp.float32) + model.bo
    return jax.nn.softmax(logits, axis=1)


if __name__ == "__main__":
    key = jax.random.PRNGKey(0)
    k_model, k_model0, k_x = jax.random.split(key, 3)

    # Small shapes consistent with the module: images (B, 1, 16, 16) -> D = 256.
    B, C, H, W = 8, 1, 16, 16
    input_size = C * H * W
    num_hidden_layers = 2
    output_size = 10

    model = FullyConnectedNetworkSoftmaxPallas(input_size, num_hidden_layers,
                                               output_size, k_model)
    x = jax.random.normal(k_x, (B, C, H, W), jnp.float32)

    out = jax.block_until_ready(model(x))
    ref = _reference_forward(model, x)
    assert out.shape == (B, output_size)
    assert jnp.allclose(out, ref, atol=2e-3, rtol=2e-3)
    assert jnp.allclose(jnp.sum(out, axis=1), 1.0, atol=1e-3)

    # Exercise the num_hidden_layers == 0 path (separate pallas_call, no weight stack).
    model0 = FullyConnectedNetworkSoftmaxPallas(input_size, 0, output_size, k_model0)
    out0 = jax.block_until_ready(model0(x))
    ref0 = _reference_forward(model0, x)
    assert out0.shape == (B, output_size)
    assert jnp.allclose(out0, ref0, atol=2e-3, rtol=2e-3)
    assert jnp.allclose(jnp.sum(out0, axis=1), 1.0, atol=1e-3)

    print("KERNEL_OK")
</pallas_src>

<mosaic_0001>
module attributes {stable_mosaic.version = 11 : i64} {
  func.func @_mlp_softmax_kernel(%arg0: i32, %arg1: memref<8x256xf32, #tpu.memory_space<vmem>>, %arg2: memref<2x256x256xbf16, #tpu.memory_space<vmem>>, %arg3: memref<2x1x256xf32, #tpu.memory_space<vmem>>, %arg4: memref<256x128xbf16, #tpu.memory_space<vmem>>, %arg5: memref<1x128xf32, #tpu.memory_space<vmem>>, %arg6: memref<8x128xf32, #tpu.memory_space<vmem>>) attributes {dimension_semantics = [#tpu.dimension_semantics<parallel>], iteration_bounds = array<i64: 1>, scalar_prefetch = 0 : i64, scratch_operands = 0 : i64, tpu.core_type = #tpu.core_type<tc>, window_params = [{transform_indices = @transform_0, window_bounds = array<i64: 8, 256>}, {pipeline_mode = #tpu.pipeline_mode<synchronous>, transform_indices = @transform_1, window_bounds = array<i64: 2, 256, 256>}, {pipeline_mode = #tpu.pipeline_mode<synchronous>, transform_indices = @transform_2, window_bounds = array<i64: 2, 1, 256>}, {pipeline_mode = #tpu.pipeline_mode<synchronous>, transform_indices = @transform_3, window_bounds = array<i64: 256, 128>}, {pipeline_mode = #tpu.pipeline_mode<synchronous>, transform_indices = @transform_4, window_bounds = array<i64: 1, 128>}, {transform_indices = @transform_5, window_bounds = array<i64: 8, 128>}]} {
    %c0 = arith.constant 0 : index
    %c0_0 = arith.constant 0 : index
    %0 = vector.load %arg1[%c0, %c0_0] : memref<8x256xf32, #tpu.memory_space<vmem>>, vector<8x256xf32>
    %1 = arith.truncf %0 : vector<8x256xf32> to vector<8x256xbf16>
    %c0_1 = arith.constant 0 : index
    %c0_2 = arith.constant 0 : index
    %c0_3 = arith.constant 0 : index
    %2 = vector.load %arg2[%c0_1, %c0_2, %c0_3] : memref<2x256x256xbf16, #tpu.memory_space<vmem>>, vector<1x256x256xbf16>
    %3 = vector.shape_cast %2 : vector<1x256x256xbf16> to vector<256x256xbf16>
    %cst = arith.constant dense<0.000000e+00> : vector<8x256xf32>
    %4 = tpu.matmul %1, %3, %cst {dimension_numbers = #tpu.dot_dimension_numbers<[1], [0], [0], [1], [0, 0, 1, 1], [], []>} : vector<8x256xbf16>, vector<256x256xbf16>, vector<8x256xf32> -> vector<8x256xf32>
    %c0_4 = arith.constant 0 : index
    %c0_5 = arith.constant 0 : index
    %c0_6 = arith.constant 0 : index
    %5 = vector.load %arg3[%c0_4, %c0_5, %c0_6] : memref<2x1x256xf32, #tpu.memory_space<vmem>>, vector<1x1x256xf32>
    %6 = vector.shape_cast %5 : vector<1x1x256xf32> to vector<1x256xf32>
    %7 = vector.broadcast %6 : vector<1x256xf32> to vector<8x256xf32>
    %8 = arith.addf %4, %7 : vector<8x256xf32>
    %cst_7 = arith.constant 0.000000e+00 : f32
    %9 = vector.broadcast %cst_7 : f32 to vector<8x256xf32>
    %10 = arith.maximumf %8, %9 : vector<8x256xf32>
    %11 = arith.truncf %10 : vector<8x256xf32> to vector<8x256xbf16>
    %c1 = arith.constant 1 : index
    %c0_8 = arith.constant 0 : index
    %c0_9 = arith.constant 0 : index
    %12 = vector.load %arg2[%c1, %c0_8, %c0_9] : memref<2x256x256xbf16, #tpu.memory_space<vmem>>, vector<1x256x256xbf16>
    %13 = vector.shape_cast %12 : vector<1x256x256xbf16> to vector<256x256xbf16>
    %cst_10 = arith.constant dense<0.000000e+00> : vector<8x256xf32>
    %14 = tpu.matmul %11, %13, %cst_10 {dimension_numbers = #tpu.dot_dimension_numbers<[1], [0], [0], [1], [0, 0, 1, 1], [], []>} : vector<8x256xbf16>, vector<256x256xbf16>, vector<8x256xf32> -> vector<8x256xf32>
    %c1_11 = arith.constant 1 : index
    %c0_12 = arith.constant 0 : index
    %c0_13 = arith.constant 0 : index
    %15 = vector.load %arg3[%c1_11, %c0_12, %c0_13] : memref<2x1x256xf32, #tpu.memory_space<vmem>>, vector<1x1x256xf32>
    %16 = vector.shape_cast %15 : vector<1x1x256xf32> to vector<1x256xf32>
    %17 = vector.broadcast %16 : vector<1x256xf32> to vector<8x256xf32>
    %18 = arith.addf %14, %17 : vector<8x256xf32>
    %cst_14 = arith.constant 0.000000e+00 : f32
    %19 = vector.broadcast %cst_14 : f32 to vector<8x256xf32>
    %20 = arith.maximumf %18, %19 : vector<8x256xf32>
    %21 = arith.truncf %20 : vector<8x256xf32> to vector<8x256xbf16>
    %c0_15 = arith.constant 0 : index
    %c0_16 = arith.constant 0 : index
    %22 = vector.load %arg4[%c0_15, %c0_16] : memref<256x128xbf16, #tpu.memory_space<vmem>>, vector<256x128xbf16>
    %cst_17 = arith.constant dense<0.000000e+00> : vector<8x128xf32>
    %23 = tpu.matmul %21, %22, %cst_17 {dimension_numbers = #tpu.dot_dimension_numbers<[1], [0], [0], [1], [0, 0, 1, 1], [], []>} : vector<8x256xbf16>, vector<256x128xbf16>, vector<8x128xf32> -> vector<8x128xf32>
    %c0_18 = arith.constant 0 : index
    %c0_19 = arith.constant 0 : index
    %24 = vector.load %arg5[%c0_18, %c0_19] : memref<1x128xf32, #tpu.memory_space<vmem>>, vector<1x128xf32>
    %25 = vector.broadcast %24 : vector<1x128xf32> to vector<8x128xf32>
    %26 = arith.addf %23, %25 : vector<8x128xf32>
    %cst_20 = arith.constant dense<0xFF800000> : vector<8xf32>
    %27 = vector.multi_reduction <maximumf>, %26, %cst_20 [1] : vector<8x128xf32> to vector<8xf32>
    %28 = vector.shape_cast %27 : vector<8xf32> to vector<8x1xf32>
    %29 = vector.broadcast %28 : vector<8x1xf32> to vector<8x128xf32>
    %30 = arith.subf %26, %29 : vector<8x128xf32>
    %31 = math.exp %30 : vector<8x128xf32>
    %cst_21 = arith.constant dense<0.000000e+00> : vector<8xf32>
    %32 = vector.multi_reduction <add>, %31, %cst_21 [1] : vector<8x128xf32> to vector<8xf32>
    %33 = vector.shape_cast %32 : vector<8xf32> to vector<8x1xf32>
    %34 = vector.broadcast %33 : vector<8x1xf32> to vector<8x128xf32>
    %35 = arith.divf %31, %34 : vector<8x128xf32>
    %c0_22 = arith.constant 0 : index
    %c0_23 = arith.constant 0 : index
    %36 = vector.load %arg6[%c0_22, %c0_23] : memref<8x128xf32, #tpu.memory_space<vmem>>, vector<8x128xf32>
    tpu.vector_store %arg6[%c0_22, %c0_23], %35 {strides = array<i32>} : memref<8x128xf32, #tpu.memory_space<vmem>>, vector<8x128xf32>,
    return
  }
  func.func @transform_0(%arg0: i32) -> (i32, i32) {
    %c0_i32 = arith.constant 0 : i32
    %c0_i32_0 = arith.constant 0 : i32
    return %arg0, %c0_i32 : i32, i32
  }
  func.func @transform_1(%arg0: i32) -> (i32, i32, i32) {
    %c0_i32 = arith.constant 0 : i32
    %c0_i32_0 = arith.constant 0 : i32
    %c0_i32_1 = arith.constant 0 : i32
    %c0_i32_2 = arith.constant 0 : i32
    return %c0_i32, %c0_i32_0, %c0_i32_1 : i32, i32, i32
  }
  func.func @transform_2(%arg0: i32) -> (i32, i32, i32) {
    %c0_i32 = arith.constant 0 : i32
    %c0_i32_0 = arith.constant 0 : i32
    %c0_i32_1 = arith.constant 0 : i32
    %c0_i32_2 = arith.constant 0 : i32
    return %c0_i32, %c0_i32_0, %c0_i32_1 : i32, i32, i32
  }
  func.func @transform_3(%arg0: i32) -> (i32, i32) {
    %c0_i32 = arith.constant 0 : i32
    %c0_i32_0 = arith.constant 0 : i32
    %c0_i32_1 = arith.constant 0 : i32
    return %c0_i32, %c0_i32_0 : i32, i32
  }
  func.func @transform_4(%arg0: i32) -> (i32, i32) {
    %c0_i32 = arith.constant 0 : i32
    %c0_i32_0 = arith.constant 0 : i32
    %c0_i32_1 = arith.constant 0 : i32
    return %c0_i32, %c0_i32_0 : i32, i32
  }
  func.func @transform_5(%arg0: i32) -> (i32, i32) {
    %c0_i32 = arith.constant 0 : i32
    %c0_i32_0 = arith.constant 0 : i32
    return %arg0, %c0_i32 : i32, i32
  }
}

module attributes {stable_mosaic.version = 11 : i64} {
  func.func @_mlp_softmax_kernel(%arg0: i32, %arg1: memref<8x256xf32, #tpu.memory_space<vmem>>, %arg2: memref<2x256x256xbf16, #tpu.memory_space<vmem>>, %arg3: memref<2x1x256xf32, #tpu.memory_space<vmem>>, %arg4: memref<256x128xbf16, #tpu.memory_space<vmem>>, %arg5: memref<1x128xf32, #tpu.memory_space<vmem>>, %arg6: memref<8x128xf32, #tpu.memory_space<vmem>>) attributes {dimension_semantics = [#tpu.dimension_semantics<parallel>], iteration_bounds = array<i64: 1>, scalar_prefetch = 0 : i64, scratch_operands = 0 : i64, tpu.core_type = #tpu.core_type<tc>, window_params = [{transform_indices = @transform_0, window_bounds = array<i64: 8, 256>}, {pipeline_mode = #tpu.pipeline_mode<synchronous>, transform_indices = @transform_1, window_bounds = array<i64: 2, 256, 256>}, {pipeline_mode = #tpu.pipeline_mode<synchronous>, transform_indices = @transform_2, window_bounds = array<i64: 2, 1, 256>}, {pipeline_mode = #tpu.pipeline_mode<synchronous>, transform_indices = @transform_3, window_bounds = array<i64: 256, 128>}, {pipeline_mode = #tpu.pipeline_mode<synchronous>, transform_indices = @transform_4, window_bounds = array<i64: 1, 128>}, {transform_indices = @transform_5, window_bounds = array<i64: 8, 128>}]} {
    %c0 = arith.constant 0 : index
    %c0_0 = arith.constant 0 : index
    %0 = vector.load %arg1[%c0, %c0_0] : memref<8x256xf32, #tpu.memory_space<vmem>>, vector<8x256xf32>
    %1 = arith.truncf %0 : vector<8x256xf32> to vector<8x256xbf16>
    %c0_1 = arith.constant 0 : index
    %c0_2 = arith.constant 0 : index
    %c0_3 = arith.constant 0 : index
    %2 = vector.load %arg2[%c0_1, %c0_2, %c0_3] : memref<2x256x256xbf16, #tpu.memory_space<vmem>>, vector<1x256x256xbf16>
    %3 = vector.shape_cast %2 : vector<1x256x256xbf16> to vector<256x256xbf16>
    %cst = arith.constant dense<0.000000e+00> : vector<8x256xf32>
    %4 = tpu.matmul %1, %3, %cst {dimension_numbers = #tpu.dot_dimension_numbers<[1], [0], [0], [1], [0, 0, 1, 1], [], []>} : vector<8x256xbf16>, vector<256x256xbf16>, vector<8x256xf32> -> vector<8x256xf32>
    %c0_4 = arith.constant 0 : index
    %c0_5 = arith.constant 0 : index
    %c0_6 = arith.constant 0 : index
    %5 = vector.load %arg3[%c0_4, %c0_5, %c0_6] : memref<2x1x256xf32, #tpu.memory_space<vmem>>, vector<1x1x256xf32>
    %6 = vector.shape_cast %5 : vector<1x1x256xf32> to vector<1x256xf32>
    %7 = vector.broadcast %6 : vector<1x256xf32> to vector<8x256xf32>
    %8 = arith.addf %4, %7 : vector<8x256xf32>
    %cst_7 = arith.constant 0.000000e+00 : f32
    %9 = vector.broadcast %cst_7 : f32 to vector<8x256xf32>
    %10 = arith.maximumf %8, %9 : vector<8x256xf32>
    %11 = arith.truncf %10 : vector<8x256xf32> to vector<8x256xbf16>
    %c1 = arith.constant 1 : index
    %c0_8 = arith.constant 0 : index
    %c0_9 = arith.constant 0 : index
    %12 = vector.load %arg2[%c1, %c0_8, %c0_9] : memref<2x256x256xbf16, #tpu.memory_space<vmem>>, vector<1x256x256xbf16>
    %13 = vector.shape_cast %12 : vector<1x256x256xbf16> to vector<256x256xbf16>
    %cst_10 = arith.constant dense<0.000000e+00> : vector<8x256xf32>
    %14 = tpu.matmul %11, %13, %cst_10 {dimension_numbers = #tpu.dot_dimension_numbers<[1], [0], [0], [1], [0, 0, 1, 1], [], []>} : vector<8x256xbf16>, vector<256x256xbf16>, vector<8x256xf32> -> vector<8x256xf32>
    %c1_11 = arith.constant 1 : index
    %c0_12 = arith.constant 0 : index
    %c0_13 = arith.constant 0 : index
    %15 = vector.load %arg3[%c1_11, %c0_12, %c0_13] : memref<2x1x256xf32, #tpu.memory_space<vmem>>, vector<1x1x256xf32>
    %16 = vector.shape_cast %15 : vector<1x1x256xf32> to vector<1x256xf32>
    %17 = vector.broadcast %16 : vector<1x256xf32> to vector<8x256xf32>
    %18 = arith.addf %14, %17 : vector<8x256xf32>
    %cst_14 = arith.constant 0.000000e+00 : f32
    %19 = vector.broadcast %cst_14 : f32 to vector<8x256xf32>
    %20 = arith.maximumf %18, %19 : vector<8x256xf32>
    %21 = arith.truncf %20 : vector<8x256xf32> to vector<8x256xbf16>
    %c0_15 = arith.constant 0 : index
    %c0_16 = arith.constant 0 : index
    %22 = vector.load %arg4[%c0_15, %c0_16] : memref<256x128xbf16, #tpu.memory_space<vmem>>, vector<256x128xbf16>
    %cst_17 = arith.constant dense<0.000000e+00> : vector<8x128xf32>
    %23 = tpu.matmul %21, %22, %cst_17 {dimension_numbers = #tpu.dot_dimension_numbers<[1], [0], [0], [1], [0, 0, 1, 1], [], []>} : vector<8x256xbf16>, vector<256x128xbf16>, vector<8x128xf32> -> vector<8x128xf32>
    %c0_18 = arith.constant 0 : index
    %c0_19 = arith.constant 0 : index
    %24 = vector.load %arg5[%c0_18, %c0_19] : memref<1x128xf32, #tpu.memory_space<vmem>>, vector<1x128xf32>
    %25 = vector.broadcast %24 : vector<1x128xf32> to vector<8x128xf32>
    %26 = arith.addf %23, %25 : vector<8x128xf32>
    %cst_20 = arith.constant dense<0xFF800000> : vector<8xf32>
    %27 = vector.multi_reduction <maximumf>, %26, %cst_20 [1] : vector<8x128xf32> to vector<8xf32>
    %28 = vector.shape_cast %27 : vector<8xf32> to vector<8x1xf32>
    %29 = vector.broadcast %28 : vector<8x1xf32> to vector<8x128xf32>
    %30 = arith.subf %26, %29 : vector<8x128xf32>
    %31 = math.exp %30 : vector<8x128xf32>
    %cst_21 = arith.constant dense<0.000000e+00> : vector<8xf32>
    %32 = vector.multi_reduction <add>, %31, %cst_21 [1] : vector<8x128xf32> to vector<8xf32>
    %33 = vector.shape_cast %32 : vector<8xf32> to vector<8x1xf32>
    %34 = vector.broadcast %33 : vector<8x1xf32> to vector<8x128xf32>
    %35 = arith.divf %31, %34 : vector<8x128xf32>
    %c0_22 = arith.constant 0 : index
    %c0_23 = arith.constant 0 : index
    %36 = vector.load %arg6[%c0_22, %c0_23] : memref<8x128xf32, #tpu.memory_space<vmem>>, vector<8x128xf32>
    tpu.vector_store %arg6[%c0_22, %c0_23], %35 {strides = array<i32>} : memref<8x128xf32, #tpu.memory_space<vmem>>, vector<8x128xf32>,
    return
  }
  func.func @transform_0(%arg0: i32) -> (i32, i32) {
    %c0_i32 = arith.constant 0 : i32
    %c0_i32_0 = arith.constant 0 : i32
    return %arg0, %c0_i32 : i32, i32
  }
  func.func @transform_1(%arg0: i32) -> (i32, i32, i32) {
    %c0_i32 = arith.constant 0 : i32
    %c0_i32_0 = arith.constant 0 : i32
    %c0_i32_1 = arith.constant 0 : i32
    %c0_i32_2 = arith.constant 0 : i32
    return %c0_i32, %c0_i32_0, %c0_i32_1 : i32, i32, i32
  }
  func.func @transform_2(%arg0: i32) -> (i32, i32, i32) {
    %c0_i32 = arith.constant 0 : i32
    %c0_i32_0 = arith.constant 0 : i32
    %c0_i32_1 = arith.constant 0 : i32
    %c0_i32_2 = arith.constant 0 : i32
    return %c0_i32, %c0_i32_0, %c0_i32_1 : i32, i32, i32
  }
  func.func @transform_3(%arg0: i32) -> (i32, i32) {
    %c0_i32 = arith.constant 0 : i32
    %c0_i32_0 = arith.constant 0 : i32
    %c0_i32_1 = arith.constant 0 : i32
    return %c0_i32, %c0_i32_0 : i32, i32
  }
  func.func @transform_4(%arg0: i32) -> (i32, i32) {
    %c0_i32 = arith.constant 0 : i32
    %c0_i32_0 = arith.constant 0 : i32
    %c0_i32_1 = arith.constant 0 : i32
    return %c0_i32, %c0_i32_0 : i32, i32
  }
  func.func @transform_5(%arg0: i32) -> (i32, i32) {
    %c0_i32 = arith.constant 0 : i32
    %c0_i32_0 = arith.constant 0 : i32
    return %arg0, %c0_i32 : i32, i32
  }
}

</mosaic_0001>

<llo_original>
// kernel: _fused_forward.1
$region0: #{_fused_forward.1}
  #allocation0 [shape = 'u32[]', space=smem, size = 0x4, offset = 0x4, fixed_abs, tag = 'smem constant byte address 0x4 - core index']
  #allocation1 [shape = 'u32[144,128]{1,0:T(1,128)}', space=vmem, size = 0x12000, scoped, tag = 'internal scratch']
  %s0 = inlined_call_operand.hbm [shape: f32[8,256], index: 0, kind: input, shape index: {}]
  %s1 = inlined_call_operand.hbm [shape: bf16[2,256,256], index: 1, kind: input, shape index: {}]
  %s2 = inlined_call_operand.hbm [shape: f32[2,1,256], index: 2, kind: input, shape index: {}]
  %s3 = inlined_call_operand.hbm [shape: bf16[256,128], index: 3, kind: input, shape index: {}]
  %s4 = inlined_call_operand.vmem [shape: f32[1,128], index: 4, kind: input, shape index: {}]
  %s5 = inlined_call_operand.hbm [shape: f32[8,128], index: 5, kind: output, shape index: {}]
  %s6 = sld [smem:[#allocation0]]
  $region46: #{_fused_forward.1} parent=0
    _
  %s8 = ssub.s32 1, %s6
  %s9 = scalar_select 0, %s8, %s6
  $region1: #{_fused_forward.1} parent=0
    #allocation2 [shape = 'u8[8192]{0}', space=vmem, size = 0x2000, scoped, tag = 'input window, operand 0, single buffered']
    #allocation3 [shape = 's32[1]{0}', space=sflag, size = 0x4, scoped, tag = 'scoped memory for _fused_forward.1']
    #allocation4 [shape = 's32[1]{0}', space=sflag, size = 0x4, scoped, tag = 'scoped memory for _fused_forward.1']
    #allocation5 [shape = 'u8[262144]{0}', space=vmem, size = 0x40000, scoped, tag = 'input window, operand 1, single buffered']
    #allocation6 [shape = 's32[1]{0}', space=sflag, size = 0x4, scoped, tag = 'scoped memory for _fused_forward.1']
    #allocation7 [shape = 'u8[2048]{0}', space=vmem, size = 0x800, scoped, tag = 'input window, operand 2, single buffered']
    #allocation8 [shape = 'u8[65536]{0}', space=vmem, size = 0x10000, scoped, tag = 'input window, operand 3, single buffered']
    #allocation9 [shape = 's32[1]{0}', space=sflag, size = 0x4, scoped, tag = 'scoped memory for _fused_forward.1']
    #allocation10 [shape = 'u8[4096]{0}', space=vmem, size = 0x1000, scoped, tag = 'output window, operand 0, single buffered']
    %10 = vsyncpa [#allocation3], 0
    %11 = vsyncpa [#allocation6], 0
    %12 = vsyncpa [#allocation9], 0
    %13 = vsyncpa [#allocation4], 0
    // Predicated region
    $region2: #{_fused_forward.1} parent=1 // pred_check
      _
    $region3: #{_fused_forward.1} parent=1 // pred_check_branch
      %15 = sbr.rel (0) target = $region5
    $region4: #{_fused_forward.1} parent=1 // pred_region
      %s17 = ssub.s32 256, 256
      %18 = vsyncadd [#allocation3], %s17
      %s20 = sshll.u32 [#allocation2], 4
      %s21 = int_to_ptr.vmem [resolvable:$true] %s20
      %23 = dma.hbm_to_vmem [thread:$0]  %s0, 256, %s21, [#allocation3]
    $region5: #{_fused_forward.1} parent=1 // pred_fallthru
      _
    // Predicated region
    $region6: #{_fused_forward.1} parent=1 // pred_check
      _
    $region7: #{_fused_forward.1} parent=1 // pred_check_branch
      %25 = sbr.rel (0) target = $region9
    $region8: #{_fused_forward.1} parent=1 // pred_region
      %s27 = ssub.s32 8192, 8192
      %28 = vsyncadd [#allocation6], %s27
      %s29 = sshll.u32 [#allocation5], 4
      %s30 = int_to_ptr.vmem [resolvable:$true] %s29
      %35 = dma.hbm_to_vmem [thread:$0]  %s1, 8192, %s30, [#allocation6], 128, 128, 8
    $region9: #{_fused_forward.1} parent=1 // pred_fallthru
      _
    // Predicated region
    $region10: #{_fused_forward.1} parent=1 // pred_check
      _
    $region11: #{_fused_forward.1} parent=1 // pred_check_branch
      %37 = sbr.rel (0) target = $region13
    $region12: #{_fused_forward.1} parent=1 // pred_region
      %s39 = ssub.s32 64, 64
      %40 = vsyncadd [#allocation6], %s39
      %s41 = sshll.u32 [#allocation7], 4
      %s42 = int_to_ptr.vmem [resolvable:$true] %s41
      %47 = dma.hbm_to_vmem [thread:$0]  %s2, 64, %s42, [#allocation6], 32, 32, 2
    $region13: #{_fused_forward.1} parent=1 // pred_fallthru
      _
    // Predicated region
    $region14: #{_fused_forward.1} parent=1 // pred_check
      _
    $region15: #{_fused_forward.1} parent=1 // pred_check_branch
      %49 = sbr.rel (0) target = $region17
    $region16: #{_fused_forward.1} parent=1 // pred_region
      %s51 = ssub.s32 2048, 2048
      %52 = vsyncadd [#allocation9], %s51
      %s53 = sshll.u32 [#allocation8], 4
      %s54 = int_to_ptr.vmem [resolvable:$true] %s53
      %59 = dma.hbm_to_vmem [thread:$0]  %s3, 2048, %s54, [#allocation9], 64, 64, 4
    $region17: #{_fused_forward.1} parent=1 // pred_fallthru
      _
    // Predicated region
    $region18: #{_fused_forward.1} parent=1 // pred_check
      _
    $region19: #{_fused_forward.1} parent=1 // pred_check_branch
      %61 = sbr.rel (0) target = $region21
    $region20: #{_fused_forward.1} parent=1 // pred_region
      _
    $region21: #{_fused_forward.1} parent=1 // pred_fallthru
      _
    // Predicated region
    $region22: #{_fused_forward.1} parent=1 // pred_check
      _
    $region23: #{_fused_forward.1} parent=1 // pred_check_branch
      %63 = sbr.rel (0) target = $region25
    $region24: #{_fused_forward.1} parent=1 // pred_region
      %64 = dma.done [#allocation3], 256
    $region25: #{_fused_forward.1} parent=1 // pred_fallthru
      _
    // Predicated region
    $region26: #{_fused_forward.1} parent=1 // pred_check
      _
    $region27: #{_fused_forward.1} parent=1 // pred_check_branch
      %66 = sbr.rel (0) target = $region29
    $region28: #{_fused_forward.1} parent=1 // pred_region
      %67 = dma.done [#allocation6], 8192
    $region29: #{_fused_forward.1} parent=1 // pred_fallthru
      _
    // Predicated region
    $region30: #{_fused_forward.1} parent=1 // pred_check
      _
    $region31: #{_fused_forward.1} parent=1 // pred_check_branch
      %69 = sbr.rel (0) target = $region33
    $region32: #{_fused_forward.1} parent=1 // pred_region
      %70 = dma.done [#allocation6], 64
    $region33: #{_fused_forward.1} parent=1 // pred_fallthru
      _
    // Predicated region
    $region34: #{_fused_forward.1} parent=1 // pred_check
      _
    $region35: #{_fused_forward.1} parent=1 // pred_check_branch
      %72 = sbr.rel (0) target = $region37
    $region36: #{_fused_forward.1} parent=1 // pred_region
      %73 = dma.done [#allocation9], 2048
    $region37: #{_fused_forward.1} parent=1 // pred_fallthru
      _
    %v75 = vld [vmem:[#allocation2] sm:$0xff]
    %v76 = vld [vmem:[#allocation2 + $0x8] sm:$0xff]
    %v77 = vpack.c.bf16 %v75, %v75
    %v78 = vpack.c.bf16 %v76, %v76
    %v79 = vld [vmem:[#allocation5] sm:$0xff]
    %v80 = vld [vmem:[#allocation5 + $0x8] sm:$0xff]
    %v81 = vld [vmem:[#allocation5 + $0x10] sm:$0xff]
    %v82 = vld [vmem:[#allocation5 + $0x18] sm:$0xff]
    %v83 = vld [vmem:[#allocation5 + $0x20] sm:$0xff]
    %v84 = vld [vmem:[#allocation5 + $0x28] sm:$0xff]
    %v85 = vld [vmem:[#allocation5 + $0x30] sm:$0xff]
    %v86 = vld [vmem:[#allocation5 + $0x38] sm:$0xff]
    %v87 = vld [vmem:[#allocation5 + $0x40] sm:$0xff]
    %v88 = vld [vmem:[#allocation5 + $0x48] sm:$0xff]
    %v89 = vld [vmem:[#allocation5 + $0x50] sm:$0xff]
    %v90 = vld [vmem:[#allocation5 + $0x58] sm:$0xff]
    %v91 = vld [vmem:[#allocation5 + $0x60] sm:$0xff]
    %v92 = vld [vmem:[#allocation5 + $0x68] sm:$0xff]
    %v93 = vld [vmem:[#allocation5 + $0x70] sm:$0xff]
    %v94 = vld [vmem:[#allocation5 + $0x78] sm:$0xff]
    %v95 = vld [vmem:[#allocation5 + $0x80] sm:$0xff]
    %v96 = vld [vmem:[#allocation5 + $0x88] sm:$0xff]
    %v97 = vld [vmem:[#allocation5 + $0x90] sm:$0xff]
    %v98 = vld [vmem:[#allocation5 + $0x98] sm:$0xff]
    %v99 = vld [vmem:[#allocation5 + $0xa0] sm:$0xff]
    %v100 = vld [vmem:[#allocation5 + $0xa8] sm:$0xff]
    %v101 = vld [vmem:[#allocation5 + $0xb0] sm:$0xff]
    %v102 = vld [vmem:[#allocation5 + $0xb8] sm:$0xff]
    %v103 = vld [vmem:[#allocation5 + $0xc0] sm:$0xff]
    %v104 = vld [vmem:[#allocation5 + $0xc8] sm:$0xff]
    %v105 = vld [vmem:[#allocation5 + $0xd0] sm:$0xff]
    %v106 = vld [vmem:[#allocation5 + $0xd8] sm:$0xff]
    %v107 = vld [vmem:[#allocation5 + $0xe0] sm:$0xff]
    %v108 = vld [vmem:[#allocation5 + $0xe8] sm:$0xff]
    %v109 = vld [vmem:[#allocation5 + $0xf0] sm:$0xff]
    %v110 = vld [vmem:[#allocation5 + $0xf8] sm:$0xff]
    %v111 = vld [vmem:[#allocation7] sm:$0x3]
    %v113 = vlaneseq
    %v114 = vshrl.u32 %v113, 7
    %v115 = vsub.s32 0, %v114
    %v116 = vrot.slane %v111, %v115
    %v117 = vlaneseq
    %v118 = vshrl.u32 %v117, 7
    %v119 = vsub.s32 1, %v118
    %v120 = vrot.slane %v111, %v119
    %v155 = vunpack.c.l.b16 %v79
    %v156 = vunpack.c.h.b16 %v79
    %v157 = vunpack.c.l.b16 %v80
    %v158 = vunpack.c.h.b16 %v80
    %v159 = vunpack.c.l.b16 %v81
    %v160 = vunpack.c.h.b16 %v81
    %v161 = vunpack.c.l.b16 %v82
    %v162 = vunpack.c.h.b16 %v82
    %v163 = vunpack.c.l.b16 %v83
    %v164 = vunpack.c.h.b16 %v83
    %v165 = vunpack.c.l.b16 %v84
    %v166 = vunpack.c.h.b16 %v84
    %v167 = vunpack.c.l.b16 %v85
    %v168 = vunpack.c.h.b16 %v85
    %v169 = vunpack.c.l.b16 %v86
    %v170 = vunpack.c.h.b16 %v86
    %v171 = vunpack.c.l.b16 %v87
    %v172 = vunpack.c.h.b16 %v87
    %v173 = vunpack.c.l.b16 %v88
    %v174 = vunpack.c.h.b16 %v88
    %v175 = vunpack.c.l.b16 %v89
    %v176 = vunpack.c.h.b16 %v89
    %v177 = vunpack.c.l.b16 %v90
    %v178 = vunpack.c.h.b16 %v90
    %v179 = vunpack.c.l.b16 %v91
    %v180 = vunpack.c.h.b16 %v91
    %v181 = vunpack.c.l.b16 %v92
    %v182 = vunpack.c.h.b16 %v92
    %v183 = vunpack.c.l.b16 %v93
    %v184 = vunpack.c.h.b16 %v93
    %v185 = vunpack.c.l.b16 %v94
    %v186 = vunpack.c.h.b16 %v94
    %v187 = vunpack.c.l.b16 %v95
    %v188 = vunpack.c.h.b16 %v95
    %v189 = vunpack.c.l.b16 %v96
    %v190 = vunpack.c.h.b16 %v96
    %v191 = vunpack.c.l.b16 %v97
    %v192 = vunpack.c.h.b16 %v97
    %v193 = vunpack.c.l.b16 %v98
    %v194 = vunpack.c.h.b16 %v98
    %v195 = vunpack.c.l.b16 %v99
    %v196 = vunpack.c.h.b16 %v99
    %v197 = vunpack.c.l.b16 %v100
    %v198 = vunpack.c.h.b16 %v100
    %v199 = vunpack.c.l.b16 %v101
    %v200 = vunpack.c.h.b16 %v101
    %v201 = vunpack.c.l.b16 %v102
    %v202 = vunpack.c.h.b16 %v102
    %v203 = vunpack.c.l.b16 %v103
    %v204 = vunpack.c.h.b16 %v103
    %v205 = vunpack.c.l.b16 %v104
    %v206 = vunpack.c.h.b16 %v104
    %v207 = vunpack.c.l.b16 %v105
    %v208 = vunpack.c.h.b16 %v105
    %v209 = vunpack.c.l.b16 %v106
    %v210 = vunpack.c.h.b16 %v106
    %v211 = vunpack.c.l.b16 %v107
    %v212 = vunpack.c.h.b16 %v107
    %v213 = vunpack.c.l.b16 %v108
    %v214 = vunpack.c.h.b16 %v108
    %v215 = vunpack.c.l.b16 %v109
    %v216 = vunpack.c.h.b16 %v109
    %v217 = vunpack.c.l.b16 %v110
    %v218 = vunpack.c.h.b16 %v110
    %v219 = vpack.c.b16 %v157, %v155
    %v220 = vpack.c.b16 %v158, %v156
    %v221 = vpack.c.b16 %v161, %v159
    %v222 = vpack.c.b16 %v162, %v160
    %v223 = vpack.c.b16 %v165, %v163
    %v224 = vpack.c.b16 %v166, %v164
    %v225 = vpack.c.b16 %v169, %v167
    %v226 = vpack.c.b16 %v170, %v168
    %v227 = vpack.c.b16 %v173, %v171
    %v228 = vpack.c.b16 %v174, %v172
    %v229 = vpack.c.b16 %v177, %v175
    %v230 = vpack.c.b16 %v178, %v176
    %v231 = vpack.c.b16 %v181, %v179
    %v232 = vpack.c.b16 %v182, %v180
    %v233 = vpack.c.b16 %v185, %v183
    %v234 = vpack.c.b16 %v186, %v184
    %v235 = vpack.c.b16 %v189, %v187
    %v236 = vpack.c.b16 %v190, %v188
    %v237 = vpack.c.b16 %v193, %v191
    %v238 = vpack.c.b16 %v194, %v192
    %v239 = vpack.c.b16 %v197, %v195
    %v240 = vpack.c.b16 %v198, %v196
    %v241 = vpack.c.b16 %v201, %v199
    %v242 = vpack.c.b16 %v202, %v200
    %v243 = vpack.c.b16 %v205, %v203
    %v244 = vpack.c.b16 %v206, %v204
    %v245 = vpack.c.b16 %v209, %v207
    %v246 = vpack.c.b16 %v210, %v208
    %v247 = vpack.c.b16 %v213, %v211
    %v248 = vpack.c.b16 %v214, %v212
    %v249 = vpack.c.b16 %v217, %v215
    %v250 = vpack.c.b16 %v218, %v216
    %283 = vmatprep.subr.bf16.mxu0 %v234
    %284 = vmatpush1.bf16.msra.mxu0 %v233
    %285 = vmatprep.subr.bf16.mxu0 %v232
    %286 = vmatpush1.bf16.msra.mxu0 %v231
    %287 = vmatprep.subr.bf16.mxu0 %v230
    %288 = vmatpush1.bf16.msra.mxu0 %v229
    %289 = vmatprep.subr.bf16.mxu0 %v228
    %290 = vmatpush1.bf16.msra.mxu0 %v227
    %291 = vmatprep.subr.bf16.mxu0 %v226
    %292 = vmatpush1.bf16.msra.mxu0 %v225
    %293 = vmatprep.subr.bf16.mxu0 %v224
    %294 = vmatpush1.bf16.msra.mxu0 %v223
    %295 = vmatprep.subr.bf16.mxu0 %v222
    %296 = vmatpush1.bf16.msra.mxu0 %v221
    %297 = vmatprep.subr.bf16.mxu0 %v220
    %298 = vmatpush1.bf16.msra.mxu0 %v219
    %299 = vmatprep.subr.bf16.mxu0 %v250
    %300 = vmatpush2.bf16.msra.mxu0 %v249
    %301 = vmatprep.subr.bf16.mxu0 %v248
    %302 = vmatpush2.bf16.msra.mxu0 %v247
    %303 = vmatprep.subr.bf16.mxu0 %v246
    %304 = vmatpush2.bf16.msra.mxu0 %v245
    %305 = vmatprep.subr.bf16.mxu0 %v244
    %306 = vmatpush2.bf16.msra.mxu0 %v243
    %307 = vmatprep.subr.bf16.mxu0 %v242
    %308 = vmatpush2.bf16.msra.mxu0 %v241
    %309 = vmatprep.subr.bf16.mxu0 %v240
    %310 = vmatpush2.bf16.msra.mxu0 %v239
    %311 = vmatprep.subr.bf16.mxu0 %v238
    %312 = vmatpush2.bf16.msra.mxu0 %v237
    %313 = vmatprep.subr.bf16.mxu0 %v236
    %314 = vmatpush2.bf16.msra.mxu0 %v235
    %315 = vmatprep.mubr.bf16.mxu0 %v78
    %316 = vmatmul.mubr.bf16.gmra.mxu0 %v77
    %v317 = vpop.f32.mrf.mxu0
    %v318 = vadd.f32 %v116, %v317
    %v319 = vpop.f32.mrf.mxu0
    %v320 = vadd.f32 %v120, %v319
    %v321 = vpop.f32.mrf.mxu0
    %v322 = vpop.f32.mrf.mxu0
    %323 = vdwg.mxu0
    %v324 = vmax.f32 %v318, 0.0
    %v325 = vmax.f32 %v320, 0.0
    %v326 = vpack.c.bf16 %v324, %v324
    %v327 = vpack.c.bf16 %v325, %v325
    %s328 = scalar_lea.vmem [#allocation5], 256
    %v329 = vld [vmem:[%s328] sm:$0xff]
    %v330 = vld [vmem:[%s328 + $0x8] sm:$0xff]
    %v331 = vld [vmem:[%s328 + $0x10] sm:$0xff]
    %v332 = vld [vmem:[%s328 + $0x18] sm:$0xff]
    %v333 = vld [vmem:[%s328 + $0x20] sm:$0xff]
    %v334 = vld [vmem:[%s328 + $0x28] sm:$0xff]
    %v335 = vld [vmem:[%s328 + $0x30] sm:$0xff]
    %v336 = vld [vmem:[%s328 + $0x38] sm:$0xff]
    %v337 = vld [vmem:[%s328 + $0x40] sm:$0xff]
    %v338 = vld [vmem:[%s328 + $0x48] sm:$0xff]
    %v339 = vld [vmem:[%s328 + $0x50] sm:$0xff]
    %v340 = vld [vmem:[%s328 + $0x58] sm:$0xff]
    %v341 = vld [vmem:[%s328 + $0x60] sm:$0xff]
    %v342 = vld [vmem:[%s328 + $0x68] sm:$0xff]
    %v343 = vld [vmem:[%s328 + $0x70] sm:$0xff]
    %v344 = vld [vmem:[%s328 + $0x78] sm:$0xff]
    %v345 = vld [vmem:[%s328 + $0x80] sm:$0xff]
    %v346 = vld [vmem:[%s328 + $0x88] sm:$0xff]
    %v347 = vld [vmem:[%s328 + $0x90] sm:$0xff]
    %v348 = vld [vmem:[%s328 + $0x98] sm:$0xff]
    %v349 = vld [vmem:[%s328 + $0xa0] sm:$0xff]
    %v350 = vld [vmem:[%s328 + $0xa8] sm:$0xff]
    %v351 = vld [vmem:[%s328 + $0xb0] sm:$0xff]
    %v352 = vld [vmem:[%s328 + $0xb8] sm:$0xff]
    %v353 = vld [vmem:[%s328 + $0xc0] sm:$0xff]
    %v354 = vld [vmem:[%s328 + $0xc8] sm:$0xff]
    %v355 = vld [vmem:[%s328 + $0xd0] sm:$0xff]
    %v356 = vld [vmem:[%s328 + $0xd8] sm:$0xff]
    %v357 = vld [vmem:[%s328 + $0xe0] sm:$0xff]
    %v358 = vld [vmem:[%s328 + $0xe8] sm:$0xff]
    %v359 = vld [vmem:[%s328 + $0xf0] sm:$0xff]
    %v360 = vld [vmem:[%s328 + $0xf8] sm:$0xff]
    %s361 = scalar_lea.vmem [#allocation7], 2
    %v362 = vld [vmem:[%s361] sm:$0x3]
    %v364 = vlaneseq
    %v365 = vshrl.u32 %v364, 7
    %v366 = vsub.s32 0, %v365
    %v367 = vrot.slane %v362, %v366
    %v368 = vlaneseq
    %v369 = vshrl.u32 %v368, 7
    %v370 = vsub.s32 1, %v369
    %v371 = vrot.slane %v362, %v370
    %v406 = vunpack.c.l.b16 %v329
    %v407 = vunpack.c.h.b16 %v329
    %v408 = vunpack.c.l.b16 %v330
    %v409 = vunpack.c.h.b16 %v330
    %v410 = vunpack.c.l.b16 %v331
    %v411 = vunpack.c.h.b16 %v331
    %v412 = vunpack.c.l.b16 %v332
    %v413 = vunpack.c.h.b16 %v332
    %v414 = vunpack.c.l.b16 %v333
    %v415 = vunpack.c.h.b16 %v333
    %v416 = vunpack.c.l.b16 %v334
    %v417 = vunpack.c.h.b16 %v334
    %v418 = vunpack.c.l.b16 %v335
    %v419 = vunpack.c.h.b16 %v335
    %v420 = vunpack.c.l.b16 %v336
    %v421 = vunpack.c.h.b16 %v336
    %v422 = vunpack.c.l.b16 %v337
    %v423 = vunpack.c.h.b16 %v337
    %v424 = vunpack.c.l.b16 %v338
    %v425 = vunpack.c.h.b16 %v338
    %v426 = vunpack.c.l.b16 %v339
    %v427 = vunpack.c.h.b16 %v339
    %v428 = vunpack.c.l.b16 %v340
    %v429 = vunpack.c.h.b16 %v340
    %v430 = vunpack.c.l.b16 %v341
    %v431 = vunpack.c.h.b16 %v341
    %v432 = vunpack.c.l.b16 %v342
    %v433 = vunpack.c.h.b16 %v342
    %v434 = vunpack.c.l.b16 %v343
    %v435 = vunpack.c.h.b16 %v343
    %v436 = vunpack.c.l.b16 %v344
    %v437 = vunpack.c.h.b16 %v344
    %v438 = vunpack.c.l.b16 %v345
    %v439 = vunpack.c.h.b16 %v345
    %v440 = vunpack.c.l.b16 %v346
    %v441 = vunpack.c.h.b16 %v346
    %v442 = vunpack.c.l.b16 %v347
    %v443 = vunpack.c.h.b16 %v347
    %v444 = vunpack.c.l.b16 %v348
    %v445 = vunpack.c.h.b16 %v348
    %v446 = vunpack.c.l.b16 %v349
    %v447 = vunpack.c.h.b16 %v349
    %v448 = vunpack.c.l.b16 %v350
    %v449 = vunpack.c.h.b16 %v350
    %v450 = vunpack.c.l.b16 %v351
    %v451 = vunpack.c.h.b16 %v351
    %v452 = vunpack.c.l.b16 %v352
    %v453 = vunpack.c.h.b16 %v352
    %v454 = vunpack.c.l.b16 %v353
    %v455 = vunpack.c.h.b16 %v353
    %v456 = vunpack.c.l.b16 %v354
    %v457 = vunpack.c.h.b16 %v354
    %v458 = vunpack.c.l.b16 %v355
    %v459 = vunpack.c.h.b16 %v355
    %v460 = vunpack.c.l.b16 %v356
    %v461 = vunpack.c.h.b16 %v356
    %v462 = vunpack.c.l.b16 %v357
    %v463 = vunpack.c.h.b16 %v357
    %v464 = vunpack.c.l.b16 %v358
    %v465 = vunpack.c.h.b16 %v358
    %v466 = vunpack.c.l.b16 %v359
    %v467 = vunpack.c.h.b16 %v359
    %v468 = vunpack.c.l.b16 %v360
    %v469 = vunpack.c.h.b16 %v360
    %v470 = vpack.c.b16 %v408, %v406
    %v471 = vpack.c.b16 %v409, %v407
    %v472 = vpack.c.b16 %v412, %v410
    %v473 = vpack.c.b16 %v413, %v411
    %v474 = vpack.c.b16 %v416, %v414
    %v475 = vpack.c.b16 %v417, %v415
    %v476 = vpack.c.b16 %v420, %v418
    %v477 = vpack.c.b16 %v421, %v419
    %v478 = vpack.c.b16 %v424, %v422
    %v479 = vpack.c.b16 %v425, %v423
    %v480 = vpack.c.b16 %v428, %v426
    %v481 = vpack.c.b16 %v429, %v427
    %v482 = vpack.c.b16 %v432, %v430
    %v483 = vpack.c.b16 %v433, %v431
    %v484 = vpack.c.b16 %v436, %v434
    %v485 = vpack.c.b16 %v437, %v435
    %v486 = vpack.c.b16 %v440, %v438
    %v487 = vpack.c.b16 %v441, %v439
    %v488 = vpack.c.b16 %v444, %v442
    %v489 = vpack.c.b16 %v445, %v443
    %v490 = vpack.c.b16 %v448, %v446
    %v491 = vpack.c.b16 %v449, %v447
    %v492 = vpack.c.b16 %v452, %v450
    %v493 = vpack.c.b16 %v453, %v451
    %v494 = vpack.c.b16 %v456, %v454
    %v495 = vpack.c.b16 %v457, %v455
    %v496 = vpack.c.b16 %v460, %v458
    %v497 = vpack.c.b16 %v461, %v459
    %v498 = vpack.c.b16 %v464, %v462
    %v499 = vpack.c.b16 %v465, %v463
    %v500 = vpack.c.b16 %v468, %v466
    %v501 = vpack.c.b16 %v469, %v467
    %534 = vmatprep.subr.bf16.mxu0 %v485
    %535 = vmatpush1.bf16.msra.mxu0 %v484
    %536 = vmatprep.subr.bf16.mxu0 %v483
    %537 = vmatpush1.bf16.msra.mxu0 %v482
    %538 = vmatprep.subr.bf16.mxu0 %v481
    %539 = vmatpush1.bf16.msra.mxu0 %v480
    %540 = vmatprep.subr.bf16.mxu0 %v479
    %541 = vmatpush1.bf16.msra.mxu0 %v478
    %542 = vmatprep.subr.bf16.mxu0 %v477
    %543 = vmatpush1.bf16.msra.mxu0 %v476
    %544 = vmatprep.subr.bf16.mxu0 %v475
    %545 = vmatpush1.bf16.msra.mxu0 %v474
    %546 = vmatprep.subr.bf16.mxu0 %v473
    %547 = vmatpush1.bf16.msra.mxu0 %v472
    %548 = vmatprep.subr.bf16.mxu0 %v471
    %549 = vmatpush1.bf16.msra.mxu0 %v470
    %550 = vmatprep.subr.bf16.mxu0 %v501
    %551 = vmatpush2.bf16.msra.mxu0 %v500
    %552 = vmatprep.subr.bf16.mxu0 %v499
    %553 = vmatpush2.bf16.msra.mxu0 %v498
    %554 = vmatprep.subr.bf16.mxu0 %v497
    %555 = vmatpush2.bf16.msra.mxu0 %v496
    %556 = vmatprep.subr.bf16.mxu0 %v495
    %557 = vmatpush2.bf16.msra.mxu0 %v494
    %558 = vmatprep.subr.bf16.mxu0 %v493
    %559 = vmatpush2.bf16.msra.mxu0 %v492
    %560 = vmatprep.subr.bf16.mxu0 %v491
    %561 = vmatpush2.bf16.msra.mxu0 %v490
    %562 = vmatprep.subr.bf16.mxu0 %v489
    %563 = vmatpush2.bf16.msra.mxu0 %v488
    %564 = vmatprep.subr.bf16.mxu0 %v487
    %565 = vmatpush2.bf16.msra.mxu0 %v486
    %566 = vmatprep.mubr.bf16.mxu0 %v327
    %567 = vmatmul.mubr.bf16.gmra.mxu0 %v326
    %v568 = vpop.f32.mrf.mxu0
    %v569 = vadd.f32 %v367, %v568
    %v570 = vpop.f32.mrf.mxu0
    %v571 = vadd.f32 %v371, %v570
    %v572 = vpop.f32.mrf.mxu0
    %v573 = vpop.f32.mrf.mxu0
    %574 = vdwg.mxu0
    %v575 = vmax.f32 %v569, 0.0
    %v576 = vmax.f32 %v571, 0.0
    %v577 = vpack.c.bf16 %v575, %v575
    %v578 = vpack.c.bf16 %v576, %v576
    %v579 = vld [vmem:[#allocation8] sm:$0xf]
    %v580 = vld [vmem:[#allocation8 + $0x4] sm:$0xf]
    %v581 = vld [vmem:[#allocation8 + $0x8] sm:$0xf]
    %v582 = vld [vmem:[#allocation8 + $0xc] sm:$0xf]
    %v583 = vld [vmem:[#allocation8 + $0x10] sm:$0xf]
    %v584 = vld [vmem:[#allocation8 + $0x14] sm:$0xf]
    %v585 = vld [vmem:[#allocation8 + $0x18] sm:$0xf]
    %v586 = vld [vmem:[#allocation8 + $0x1c] sm:$0xf]
    %v587 = vld [vmem:[#allocation8 + $0x20] sm:$0xf]
    %v588 = vld [vmem:[#allocation8 + $0x24] sm:$0xf]
    %v589 = vld [vmem:[#allocation8 + $0x28] sm:$0xf]
    %v590 = vld [vmem:[#allocation8 + $0x2c] sm:$0xf]
    %v591 = vld [vmem:[#allocation8 + $0x30] sm:$0xf]
    %v592 = vld [vmem:[#allocation8 + $0x34] sm:$0xf]
    %v593 = vld [vmem:[#allocation8 + $0x38] sm:$0xf]
    %v594 = vld [vmem:[#allocation8 + $0x3c] sm:$0xf]
    %v595 = vld [vmem:[#allocation8 + $0x40] sm:$0xf]
    %v596 = vld [vmem:[#allocation8 + $0x44] sm:$0xf]
    %v597 = vld [vmem:[#allocation8 + $0x48] sm:$0xf]
    %v598 = vld [vmem:[#allocation8 + $0x4c] sm:$0xf]
    %v599 = vld [vmem:[#allocation8 + $0x50] sm:$0xf]
    %v600 = vld [vmem:[#allocation8 + $0x54] sm:$0xf]
    %v601 = vld [vmem:[#allocation8 + $0x58] sm:$0xf]
    %v602 = vld [vmem:[#allocation8 + $0x5c] sm:$0xf]
    %v603 = vld [vmem:[#allocation8 + $0x60] sm:$0xf]
    %v604 = vld [vmem:[#allocation8 + $0x64] sm:$0xf]
    %v605 = vld [vmem:[#allocation8 + $0x68] sm:$0xf]
    %v606 = vld [vmem:[#allocation8 + $0x6c] sm:$0xf]
    %v607 = vld [vmem:[#allocation8 + $0x70] sm:$0xf]
    %v608 = vld [vmem:[#allocation8 + $0x74] sm:$0xf]
    %v609 = vld [vmem:[#allocation8 + $0x78] sm:$0xf]
    %v610 = vld [vmem:[#allocation8 + $0x7c] sm:$0xf]
    %v611 = vld [vmem:[%s4] sm:$0x1]
    %v613 = vlaneseq
    %v614 = vshrl.u32 %v613, 7
    %v615 = vsub.s32 0, %v614
    %v616 = vrot.slane %v611, %v615
    %v650 = vunpack.c.l.b16 %v579
    %v651 = vunpack.c.l.b16 %v580
    %v652 = vunpack.c.l.b16 %v581
    %v653 = vunpack.c.l.b16 %v582
    %v654 = vunpack.c.l.b16 %v583
    %v655 = vunpack.c.l.b16 %v584
    %v656 = vunpack.c.l.b16 %v585
    %v657 = vunpack.c.l.b16 %v586
    %v658 = vunpack.c.l.b16 %v587
    %v659 = vunpack.c.l.b16 %v588
    %v660 = vunpack.c.l.b16 %v589
    %v661 = vunpack.c.l.b16 %v590
    %v662 = vunpack.c.l.b16 %v591
    %v663 = vunpack.c.l.b16 %v592
    %v664 = vunpack.c.l.b16 %v593
    %v665 = vunpack.c.l.b16 %v594
    %v666 = vunpack.c.l.b16 %v595
    %v667 = vunpack.c.l.b16 %v596
    %v668 = vunpack.c.l.b16 %v597
    %v669 = vunpack.c.l.b16 %v598
    %v670 = vunpack.c.l.b16 %v599
    %v671 = vunpack.c.l.b16 %v600
    %v672 = vunpack.c.l.b16 %v601
    %v673 = vunpack.c.l.b16 %v602
    %v674 = vunpack.c.l.b16 %v603
    %v675 = vunpack.c.l.b16 %v604
    %v676 = vunpack.c.l.b16 %v605
    %v677 = vunpack.c.l.b16 %v606
    %v678 = vunpack.c.l.b16 %v607
    %v679 = vunpack.c.l.b16 %v608
    %v680 = vunpack.c.l.b16 %v609
    %v681 = vunpack.c.l.b16 %v610
    %v682 = vpack.c.b16 %v651, %v650
    %v683 = vpack.c.b16 %v653, %v652
    %v684 = vpack.c.b16 %v655, %v654
    %v685 = vpack.c.b16 %v657, %v656
    %v686 = vpack.c.b16 %v659, %v658
    %v687 = vpack.c.b16 %v661, %v660
    %v688 = vpack.c.b16 %v663, %v662
    %v689 = vpack.c.b16 %v665, %v664
    %v690 = vpack.c.b16 %v667, %v666
    %v691 = vpack.c.b16 %v669, %v668
    %v692 = vpack.c.b16 %v671, %v670
    %v693 = vpack.c.b16 %v673, %v672
    %v694 = vpack.c.b16 %v675, %v674
    %v695 = vpack.c.b16 %v677, %v676
    %v696 = vpack.c.b16 %v679, %v678
    %v697 = vpack.c.b16 %v681, %v680
    %714 = vmatprep.subr.bf16.mxu0 0
    %715 = vmatpush1.bf16.msra.mxu0 %v689
    %716 = vmatprep.subr.bf16.mxu0 0
    %717 = vmatpush1.bf16.msra.mxu0 %v688
    %718 = vmatprep.subr.bf16.mxu0 0
    %719 = vmatpush1.bf16.msra.mxu0 %v687
    %720 = vmatprep.subr.bf16.mxu0 0
    %721 = vmatpush1.bf16.msra.mxu0 %v686
    %722 = vmatprep.subr.bf16.mxu0 0
    %723 = vmatpush1.bf16.msra.mxu0 %v685
    %724 = vmatprep.subr.bf16.mxu0 0
    %725 = vmatpush1.bf16.msra.mxu0 %v684
    %726 = vmatprep.subr.bf16.mxu0 0
    %727 = vmatpush1.bf16.msra.mxu0 %v683
    %728 = vmatprep.subr.bf16.mxu0 0
    %729 = vmatpush1.bf16.msra.mxu0 %v682
    %730 = vmatprep.subr.bf16.mxu0 0
    %731 = vmatpush2.bf16.msra.mxu0 %v697
    %732 = vmatprep.subr.bf16.mxu0 0
    %733 = vmatpush2.bf16.msra.mxu0 %v696
    %734 = vmatprep.subr.bf16.mxu0 0
    %735 = vmatpush2.bf16.msra.mxu0 %v695
    %736 = vmatprep.subr.bf16.mxu0 0
    %737 = vmatpush2.bf16.msra.mxu0 %v694
    %738 = vmatprep.subr.bf16.mxu0 0
    %739 = vmatpush2.bf16.msra.mxu0 %v693
    %740 = vmatprep.subr.bf16.mxu0 0
    %741 = vmatpush2.bf16.msra.mxu0 %v692
    %742 = vmatprep.subr.bf16.mxu0 0
    %743 = vmatpush2.bf16.msra.mxu0 %v691
    %744 = vmatprep.subr.bf16.mxu0 0
    %745 = vmatpush2.bf16.msra.mxu0 %v690
    %746 = vmatprep.mubr.bf16.mxu0 %v578
    %747 = vmatmul.mubr.bf16.gmra.mxu0 %v577
    %v748 = vpop.f32.mrf.mxu0
    %v749 = vadd.f32 %v616, %v748
    %v750 = vpop.f32.mrf.mxu0
    %v751 = vpop.f32.mrf.mxu0
    %v752 = vpop.f32.mrf.mxu0
    %753 = vdwg.mxu0
    %754 = vmax.xlane.f32.xlu0 %v749
    %v755 = vpop.xlane.xlu0 %754
    %v756 = vsub.f32 %v749, %v755
    %v757 = vmul.f32 %v756, 1.442695
    %v758 = vpow.pop %v757
    %759 = vadd.xlane.f32.xlu0 %v758
    %v760 = vpop.xlane.xlu0 %759
    %v761 = vrcp.pop %v760
    %v762 = vmul.f32 %v758, %v761
    %763 = vst [vmem:[#allocation10] sm:$0xff] %v762
    // Predicated region
    $region38: #{_fused_forward.1} parent=1 // pred_check
      _
    $region39: #{_fused_forward.1} parent=1 // pred_check_branch
      %765 = sbr.rel (0) target = $region41
    $region40: #{_fused_forward.1} parent=1 // pred_region
      %s767 = ssub.s32 128, 128
      %768 = vsyncadd [#allocation4], %s767
      %s770 = sshll.u32 [#allocation10], 4
      %s771 = int_to_ptr.vmem [resolvable:$true] %s770
      %773 = dma.vmem_to_hbm [thread:$0]  %s771, 128, %s5, [#allocation4]
    $region41: #{_fused_forward.1} parent=1 // pred_fallthru
      _
    // Predicated region
    $region42: #{_fused_forward.1} parent=1 // pred_check
      _
    $region43: #{_fused_forward.1} parent=1 // pred_check_branch
      %775 = sbr.rel (0) target = $region45
    $region44: #{_fused_forward.1} parent=1 // pred_region
      %776 = dma.done [#allocation4], 128
    $region45: #{_fused_forward.1} parent=1 // pred_fallthru
      _
    %777 = vsyncpa [#allocation3], 1
    %778 = vsyncpa [#allocation6], 1
    %779 = vsyncpa [#allocation9], 1
    %780 = vsyncpa [#allocation4], 1

// kernel: _fused_forward.1
$region0: #{_fused_forward.1}
  #allocation0 [shape = 'u32[]', space=smem, size = 0x4, offset = 0x4, fixed_abs, tag = 'smem constant byte address 0x4 - core index']
  #allocation1 [shape = 'u32[144,128]{1,0:T(1,128)}', space=vmem, size = 0x12000, scoped, tag = 'internal scratch']
  %s0 = inlined_call_operand.hbm [shape: f32[8,256], index: 0, kind: input, shape index: {}]
  %s1 = inlined_call_operand.hbm [shape: bf16[2,256,256], index: 1, kind: input, shape index: {}]
  %s2 = inlined_call_operand.hbm [shape: f32[2,1,256], index: 2, kind: input, shape index: {}]
  %s3 = inlined_call_operand.hbm [shape: bf16[256,128], index: 3, kind: input, shape index: {}]
  %s4 = inlined_call_operand.vmem [shape: f32[1,128], index: 4, kind: input, shape index: {}]
  %s5 = inlined_call_operand.hbm [shape: f32[8,128], index: 5, kind: output, shape index: {}]
  %s6 = sld [smem:[#allocation0]]
  $region46: #{_fused_forward.1} parent=0
    _
  %s8 = ssub.s32 1, %s6
  %s9 = scalar_select 0, %s8, %s6
  $region1: #{_fused_forward.1} parent=0
    #allocation2 [shape = 'u8[8192]{0}', space=vmem, size = 0x2000, scoped, tag = 'input window, operand 0, single buffered']
    #allocation3 [shape = 's32[1]{0}', space=sflag, size = 0x4, scoped, tag = 'scoped memory for _fused_forward.1']
    #allocation4 [shape = 's32[1]{0}', space=sflag, size = 0x4, scoped, tag = 'scoped memory for _fused_forward.1']
    #allocation5 [shape = 'u8[262144]{0}', space=vmem, size = 0x40000, scoped, tag = 'input window, operand 1, single buffered']
    #allocation6 [shape = 's32[1]{0}', space=sflag, size = 0x4, scoped, tag = 'scoped memory for _fused_forward.1']
    #allocation7 [shape = 'u8[2048]{0}', space=vmem, size = 0x800, scoped, tag = 'input window, operand 2, single buffered']
    #allocation8 [shape = 'u8[65536]{0}', space=vmem, size = 0x10000, scoped, tag = 'input window, operand 3, single buffered']
    #allocation9 [shape = 's32[1]{0}', space=sflag, size = 0x4, scoped, tag = 'scoped memory for _fused_forward.1']
    #allocation10 [shape = 'u8[4096]{0}', space=vmem, size = 0x1000, scoped, tag = 'output window, operand 0, single buffered']
    %10 = vsyncpa [#allocation3], 0
    %11 = vsyncpa [#allocation6], 0
    %12 = vsyncpa [#allocation9], 0
    %13 = vsyncpa [#allocation4], 0
    // Predicated region
    $region2: #{_fused_forward.1} parent=1 // pred_check
      _
    $region3: #{_fused_forward.1} parent=1 // pred_check_branch
      %15 = sbr.rel (0) target = $region5
    $region4: #{_fused_forward.1} parent=1 // pred_region
      %s17 = ssub.s32 256, 256
      %18 = vsyncadd [#allocation3], %s17
      %s20 = sshll.u32 [#allocation2], 4
      %s21 = int_to_ptr.vmem [resolvable:$true] %s20
      %23 = dma.hbm_to_vmem [thread:$0]  %s0, 256, %s21, [#allocation3]
    $region5: #{_fused_forward.1} parent=1 // pred_fallthru
      _
    // Predicated region
    $region6: #{_fused_forward.1} parent=1 // pred_check
      _
    $region7: #{_fused_forward.1} parent=1 // pred_check_branch
      %25 = sbr.rel (0) target = $region9
    $region8: #{_fused_forward.1} parent=1 // pred_region
      %s27 = ssub.s32 8192, 8192
      %28 = vsyncadd [#allocation6], %s27
      %s29 = sshll.u32 [#allocation5], 4
      %s30 = int_to_ptr.vmem [resolvable:$true] %s29
      %35 = dma.hbm_to_vmem [thread:$0]  %s1, 8192, %s30, [#allocation6], 128, 128, 8
    $region9: #{_fused_forward.1} parent=1 // pred_fallthru
      _
    // Predicated region
    $region10: #{_fused_forward.1} parent=1 // pred_check
      _
    $region11: #{_fused_forward.1} parent=1 // pred_check_branch
      %37 = sbr.rel (0) target = $region13
    $region12: #{_fused_forward.1} parent=1 // pred_region
      %s39 = ssub.s32 64, 64
      %40 = vsyncadd [#allocation6], %s39
      %s41 = sshll.u32 [#allocation7], 4
      %s42 = int_to_ptr.vmem [resolvable:$true] %s41
      %47 = dma.hbm_to_vmem [thread:$0]  %s2, 64, %s42, [#allocation6], 32, 32, 2
    $region13: #{_fused_forward.1} parent=1 // pred_fallthru
      _
    // Predicated region
    $region14: #{_fused_forward.1} parent=1 // pred_check
      _
    $region15: #{_fused_forward.1} parent=1 // pred_check_branch
      %49 = sbr.rel (0) target = $region17
    $region16: #{_fused_forward.1} parent=1 // pred_region
      %s51 = ssub.s32 2048, 2048
      %52 = vsyncadd [#allocation9], %s51
      %s53 = sshll.u32 [#allocation8], 4
      %s54 = int_to_ptr.vmem [resolvable:$true] %s53
      %59 = dma.hbm_to_vmem [thread:$0]  %s3, 2048, %s54, [#allocation9], 64, 64, 4
    $region17: #{_fused_forward.1} parent=1 // pred_fallthru
      _
    // Predicated region
    $region18: #{_fused_forward.1} parent=1 // pred_check
      _
    $region19: #{_fused_forward.1} parent=1 // pred_check_branch
      %61 = sbr.rel (0) target = $region21
    $region20: #{_fused_forward.1} parent=1 // pred_region
      _
    $region21: #{_fused_forward.1} parent=1 // pred_fallthru
      _
    // Predicated region
    $region22: #{_fused_forward.1} parent=1 // pred_check
      _
    $region23: #{_fused_forward.1} parent=1 // pred_check_branch
      %63 = sbr.rel (0) target = $region25
    $region24: #{_fused_forward.1} parent=1 // pred_region
      %64 = dma.done [#allocation3], 256
    $region25: #{_fused_forward.1} parent=1 // pred_fallthru
      _
    // Predicated region
    $region26: #{_fused_forward.1} parent=1 // pred_check
      _
    $region27: #{_fused_forward.1} parent=1 // pred_check_branch
      %66 = sbr.rel (0) target = $region29
    $region28: #{_fused_forward.1} parent=1 // pred_region
      %67 = dma.done [#allocation6], 8192
    $region29: #{_fused_forward.1} parent=1 // pred_fallthru
      _
    // Predicated region
    $region30: #{_fused_forward.1} parent=1 // pred_check
      _
    $region31: #{_fused_forward.1} parent=1 // pred_check_branch
      %69 = sbr.rel (0) target = $region33
    $region32: #{_fused_forward.1} parent=1 // pred_region
      %70 = dma.done [#allocation6], 64
    $region33: #{_fused_forward.1} parent=1 // pred_fallthru
      _
    // Predicated region
    $region34: #{_fused_forward.1} parent=1 // pred_check
      _
    $region35: #{_fused_forward.1} parent=1 // pred_check_branch
      %72 = sbr.rel (0) target = $region37
    $region36: #{_fused_forward.1} parent=1 // pred_region
      %73 = dma.done [#allocation9], 2048
    $region37: #{_fused_forward.1} parent=1 // pred_fallthru
      _
    %v75 = vld [vmem:[#allocation2] sm:$0xff]
    %v76 = vld [vmem:[#allocation2 + $0x8] sm:$0xff]
    %v77 = vpack.c.bf16 %v75, %v75
    %v78 = vpack.c.bf16 %v76, %v76
    %v79 = vld [vmem:[#allocation5] sm:$0xff]
    %v80 = vld [vmem:[#allocation5 + $0x8] sm:$0xff]
    %v81 = vld [vmem:[#allocation5 + $0x10] sm:$0xff]
    %v82 = vld [vmem:[#allocation5 + $0x18] sm:$0xff]
    %v83 = vld [vmem:[#allocation5 + $0x20] sm:$0xff]
    %v84 = vld [vmem:[#allocation5 + $0x28] sm:$0xff]
    %v85 = vld [vmem:[#allocation5 + $0x30] sm:$0xff]
    %v86 = vld [vmem:[#allocation5 + $0x38] sm:$0xff]
    %v87 = vld [vmem:[#allocation5 + $0x40] sm:$0xff]
    %v88 = vld [vmem:[#allocation5 + $0x48] sm:$0xff]
    %v89 = vld [vmem:[#allocation5 + $0x50] sm:$0xff]
    %v90 = vld [vmem:[#allocation5 + $0x58] sm:$0xff]
    %v91 = vld [vmem:[#allocation5 + $0x60] sm:$0xff]
    %v92 = vld [vmem:[#allocation5 + $0x68] sm:$0xff]
    %v93 = vld [vmem:[#allocation5 + $0x70] sm:$0xff]
    %v94 = vld [vmem:[#allocation5 + $0x78] sm:$0xff]
    %v95 = vld [vmem:[#allocation5 + $0x80] sm:$0xff]
    %v96 = vld [vmem:[#allocation5 + $0x88] sm:$0xff]
    %v97 = vld [vmem:[#allocation5 + $0x90] sm:$0xff]
    %v98 = vld [vmem:[#allocation5 + $0x98] sm:$0xff]
    %v99 = vld [vmem:[#allocation5 + $0xa0] sm:$0xff]
    %v100 = vld [vmem:[#allocation5 + $0xa8] sm:$0xff]
    %v101 = vld [vmem:[#allocation5 + $0xb0] sm:$0xff]
    %v102 = vld [vmem:[#allocation5 + $0xb8] sm:$0xff]
    %v103 = vld [vmem:[#allocation5 + $0xc0] sm:$0xff]
    %v104 = vld [vmem:[#allocation5 + $0xc8] sm:$0xff]
    %v105 = vld [vmem:[#allocation5 + $0xd0] sm:$0xff]
    %v106 = vld [vmem:[#allocation5 + $0xd8] sm:$0xff]
    %v107 = vld [vmem:[#allocation5 + $0xe0] sm:$0xff]
    %v108 = vld [vmem:[#allocation5 + $0xe8] sm:$0xff]
    %v109 = vld [vmem:[#allocation5 + $0xf0] sm:$0xff]
    %v110 = vld [vmem:[#allocation5 + $0xf8] sm:$0xff]
    %v111 = vld [vmem:[#allocation7] sm:$0x3]
    %v113 = vlaneseq
    %v114 = vshrl.u32 %v113, 7
    %v115 = vsub.s32 0, %v114
    %v116 = vrot.slane %v111, %v115
    %v117 = vlaneseq
    %v118 = vshrl.u32 %v117, 7
    %v119 = vsub.s32 1, %v118
    %v120 = vrot.slane %v111, %v119
    %v155 = vunpack.c.l.b16 %v79
    %v156 = vunpack.c.h.b16 %v79
    %v157 = vunpack.c.l.b16 %v80
    %v158 = vunpack.c.h.b16 %v80
    %v159 = vunpack.c.l.b16 %v81
    %v160 = vunpack.c.h.b16 %v81
    %v161 = vunpack.c.l.b16 %v82
    %v162 = vunpack.c.h.b16 %v82
    %v163 = vunpack.c.l.b16 %v83
    %v164 = vunpack.c.h.b16 %v83
    %v165 = vunpack.c.l.b16 %v84
    %v166 = vunpack.c.h.b16 %v84
    %v167 = vunpack.c.l.b16 %v85
    %v168 = vunpack.c.h.b16 %v85
    %v169 = vunpack.c.l.b16 %v86
    %v170 = vunpack.c.h.b16 %v86
    %v171 = vunpack.c.l.b16 %v87
    %v172 = vunpack.c.h.b16 %v87
    %v173 = vunpack.c.l.b16 %v88
    %v174 = vunpack.c.h.b16 %v88
    %v175 = vunpack.c.l.b16 %v89
    %v176 = vunpack.c.h.b16 %v89
    %v177 = vunpack.c.l.b16 %v90
    %v178 = vunpack.c.h.b16 %v90
    %v179 = vunpack.c.l.b16 %v91
    %v180 = vunpack.c.h.b16 %v91
    %v181 = vunpack.c.l.b16 %v92
    %v182 = vunpack.c.h.b16 %v92
    %v183 = vunpack.c.l.b16 %v93
    %v184 = vunpack.c.h.b16 %v93
    %v185 = vunpack.c.l.b16 %v94
    %v186 = vunpack.c.h.b16 %v94
    %v187 = vunpack.c.l.b16 %v95
    %v188 = vunpack.c.h.b16 %v95
    %v189 = vunpack.c.l.b16 %v96
    %v190 = vunpack.c.h.b16 %v96
    %v191 = vunpack.c.l.b16 %v97
    %v192 = vunpack.c.h.b16 %v97
    %v193 = vunpack.c.l.b16 %v98
    %v194 = vunpack.c.h.b16 %v98
    %v195 = vunpack.c.l.b16 %v99
    %v196 = vunpack.c.h.b16 %v99
    %v197 = vunpack.c.l.b16 %v100
    %v198 = vunpack.c.h.b16 %v100
    %v199 = vunpack.c.l.b16 %v101
    %v200 = vunpack.c.h.b16 %v101
    %v201 = vunpack.c.l.b16 %v102
    %v202 = vunpack.c.h.b16 %v102
    %v203 = vunpack.c.l.b16 %v103
    %v204 = vunpack.c.h.b16 %v103
    %v205 = vunpack.c.l.b16 %v104
    %v206 = vunpack.c.h.b16 %v104
    %v207 = vunpack.c.l.b16 %v105
    %v208 = vunpack.c.h.b16 %v105
    %v209 = vunpack.c.l.b16 %v106
    %v210 = vunpack.c.h.b16 %v106
    %v211 = vunpack.c.l.b16 %v107
    %v212 = vunpack.c.h.b16 %v107
    %v213 = vunpack.c.l.b16 %v108
    %v214 = vunpack.c.h.b16 %v108
    %v215 = vunpack.c.l.b16 %v109
    %v216 = vunpack.c.h.b16 %v109
    %v217 = vunpack.c.l.b16 %v110
    %v218 = vunpack.c.h.b16 %v110
    %v219 = vpack.c.b16 %v157, %v155
    %v220 = vpack.c.b16 %v158, %v156
    %v221 = vpack.c.b16 %v161, %v159
    %v222 = vpack.c.b16 %v162, %v160
    %v223 = vpack.c.b16 %v165, %v163
    %v224 = vpack.c.b16 %v166, %v164
    %v225 = vpack.c.b16 %v169, %v167
    %v226 = vpack.c.b16 %v170, %v168
    %v227 = vpack.c.b16 %v173, %v171
    %v228 = vpack.c.b16 %v174, %v172
    %v229 = vpack.c.b16 %v177, %v175
    %v230 = vpack.c.b16 %v178, %v176
    %v231 = vpack.c.b16 %v181, %v179
    %v232 = vpack.c.b16 %v182, %v180
    %v233 = vpack.c.b16 %v185, %v183
    %v234 = vpack.c.b16 %v186, %v184
    %v235 = vpack.c.b16 %v189, %v187
    %v236 = vpack.c.b16 %v190, %v188
    %v237 = vpack.c.b16 %v193, %v191
    %v238 = vpack.c.b16 %v194, %v192
    %v239 = vpack.c.b16 %v197, %v195
    %v240 = vpack.c.b16 %v198, %v196
    %v241 = vpack.c.b16 %v201, %v199
    %v242 = vpack.c.b16 %v202, %v200
    %v243 = vpack.c.b16 %v205, %v203
    %v244 = vpack.c.b16 %v206, %v204
    %v245 = vpack.c.b16 %v209, %v207
    %v246 = vpack.c.b16 %v210, %v208
    %v247 = vpack.c.b16 %v213, %v211
    %v248 = vpack.c.b16 %v214, %v212
    %v249 = vpack.c.b16 %v217, %v215
    %v250 = vpack.c.b16 %v218, %v216
    %283 = vmatprep.subr.bf16.mxu0 %v234
    %284 = vmatpush1.bf16.msra.mxu0 %v233
    %285 = vmatprep.subr.bf16.mxu0 %v232
    %286 = vmatpush1.bf16.msra.mxu0 %v231
    %287 = vmatprep.subr.bf16.mxu0 %v230
    %288 = vmatpush1.bf16.msra.mxu0 %v229
    %289 = vmatprep.subr.bf16.mxu0 %v228
    %290 = vmatpush1.bf16.msra.mxu0 %v227
    %291 = vmatprep.subr.bf16.mxu0 %v226
    %292 = vmatpush1.bf16.msra.mxu0 %v225
    %293 = vmatprep.subr.bf16.mxu0 %v224
    %294 = vmatpush1.bf16.msra.mxu0 %v223
    %295 = vmatprep.subr.bf16.mxu0 %v222
    %296 = vmatpush1.bf16.msra.mxu0 %v221
    %297 = vmatprep.subr.bf16.mxu0 %v220
    %298 = vmatpush1.bf16.msra.mxu0 %v219
    %299 = vmatprep.subr.bf16.mxu0 %v250
    %300 = vmatpush2.bf16.msra.mxu0 %v249
    %301 = vmatprep.subr.bf16.mxu0 %v248
    %302 = vmatpush2.bf16.msra.mxu0 %v247
    %303 = vmatprep.subr.bf16.mxu0 %v246
    %304 = vmatpush2.bf16.msra.mxu0 %v245
    %305 = vmatprep.subr.bf16.mxu0 %v244
    %306 = vmatpush2.bf16.msra.mxu0 %v243
    %307 = vmatprep.subr.bf16.mxu0 %v242
    %308 = vmatpush2.bf16.msra.mxu0 %v241
    %309 = vmatprep.subr.bf16.mxu0 %v240
    %310 = vmatpush2.bf16.msra.mxu0 %v239
    %311 = vmatprep.subr.bf16.mxu0 %v238
    %312 = vmatpush2.bf16.msra.mxu0 %v237
    %313 = vmatprep.subr.bf16.mxu0 %v236
    %314 = vmatpush2.bf16.msra.mxu0 %v235
    %315 = vmatprep.mubr.bf16.mxu0 %v78
    %316 = vmatmul.mubr.bf16.gmra.mxu0 %v77
    %v317 = vpop.f32.mrf.mxu0
    %v318 = vadd.f32 %v116, %v317
    %v319 = vpop.f32.mrf.mxu0
    %v320 = vadd.f32 %v120, %v319
    %v321 = vpop.f32.mrf.mxu0
    %v322 = vpop.f32.mrf.mxu0
    %323 = vdwg.mxu0
    %v324 = vmax.f32 %v318, 0.0
    %v325 = vmax.f32 %v320, 0.0
    %v326 = vpack.c.bf16 %v324, %v324
    %v327 = vpack.c.bf16 %v325, %v325
    %s328 = scalar_lea.vmem [#allocation5], 256
    %v329 = vld [vmem:[%s328] sm:$0xff]
    %v330 = vld [vmem:[%s328 + $0x8] sm:$0xff]
    %v331 = vld [vmem:[%s328 + $0x10] sm:$0xff]
    %v332 = vld [vmem:[%s328 + $0x18] sm:$0xff]
    %v333 = vld [vmem:[%s328 + $0x20] sm:$0xff]
    %v334 = vld [vmem:[%s328 + $0x28] sm:$0xff]
    %v335 = vld [vmem:[%s328 + $0x30] sm:$0xff]
    %v336 = vld [vmem:[%s328 + $0x38] sm:$0xff]
    %v337 = vld [vmem:[%s328 + $0x40] sm:$0xff]
    %v338 = vld [vmem:[%s328 + $0x48] sm:$0xff]
    %v339 = vld [vmem:[%s328 + $0x50] sm:$0xff]
    %v340 = vld [vmem:[%s328 + $0x58] sm:$0xff]
    %v341 = vld [vmem:[%s328 + $0x60] sm:$0xff]
    %v342 = vld [vmem:[%s328 + $0x68] sm:$0xff]
    %v343 = vld [vmem:[%s328 + $0x70] sm:$0xff]
    %v344 = vld [vmem:[%s328 + $0x78] sm:$0xff]
    %v345 = vld [vmem:[%s328 + $0x80] sm:$0xff]
    %v346 = vld [vmem:[%s328 + $0x88] sm:$0xff]
    %v347 = vld [vmem:[%s328 + $0x90] sm:$0xff]
    %v348 = vld [vmem:[%s328 + $0x98] sm:$0xff]
    %v349 = vld [vmem:[%s328 + $0xa0] sm:$0xff]
    %v350 = vld [vmem:[%s328 + $0xa8] sm:$0xff]
    %v351 = vld [vmem:[%s328 + $0xb0] sm:$0xff]
    %v352 = vld [vmem:[%s328 + $0xb8] sm:$0xff]
    %v353 = vld [vmem:[%s328 + $0xc0] sm:$0xff]
    %v354 = vld [vmem:[%s328 + $0xc8] sm:$0xff]
    %v355 = vld [vmem:[%s328 + $0xd0] sm:$0xff]
    %v356 = vld [vmem:[%s328 + $0xd8] sm:$0xff]
    %v357 = vld [vmem:[%s328 + $0xe0] sm:$0xff]
    %v358 = vld [vmem:[%s328 + $0xe8] sm:$0xff]
    %v359 = vld [vmem:[%s328 + $0xf0] sm:$0xff]
    %v360 = vld [vmem:[%s328 + $0xf8] sm:$0xff]
    %s361 = scalar_lea.vmem [#allocation7], 2
    %v362 = vld [vmem:[%s361] sm:$0x3]
    %v364 = vlaneseq
    %v365 = vshrl.u32 %v364, 7
    %v366 = vsub.s32 0, %v365
    %v367 = vrot.slane %v362, %v366
    %v368 = vlaneseq
    %v369 = vshrl.u32 %v368, 7
    %v370 = vsub.s32 1, %v369
    %v371 = vrot.slane %v362, %v370
    %v406 = vunpack.c.l.b16 %v329
    %v407 = vunpack.c.h.b16 %v329
    %v408 = vunpack.c.l.b16 %v330
    %v409 = vunpack.c.h.b16 %v330
    %v410 = vunpack.c.l.b16 %v331
    %v411 = vunpack.c.h.b16 %v331
    %v412 = vunpack.c.l.b16 %v332
    %v413 = vunpack.c.h.b16 %v332
    %v414 = vunpack.c.l.b16 %v333
    %v415 = vunpack.c.h.b16 %v333
    %v416 = vunpack.c.l.b16 %v334
    %v417 = vunpack.c.h.b16 %v334
    %v418 = vunpack.c.l.b16 %v335
    %v419 = vunpack.c.h.b16 %v335
    %v420 = vunpack.c.l.b16 %v336
    %v421 = vunpack.c.h.b16 %v336
    %v422 = vunpack.c.l.b16 %v337
    %v423 = vunpack.c.h.b16 %v337
    %v424 = vunpack.c.l.b16 %v338
    %v425 = vunpack.c.h.b16 %v338
    %v426 = vunpack.c.l.b16 %v339
    %v427 = vunpack.c.h.b16 %v339
    %v428 = vunpack.c.l.b16 %v340
    %v429 = vunpack.c.h.b16 %v340
    %v430 = vunpack.c.l.b16 %v341
    %v431 = vunpack.c.h.b16 %v341
    %v432 = vunpack.c.l.b16 %v342
    %v433 = vunpack.c.h.b16 %v342
    %v434 = vunpack.c.l.b16 %v343
    %v435 = vunpack.c.h.b16 %v343
    %v436 = vunpack.c.l.b16 %v344
    %v437 = vunpack.c.h.b16 %v344
    %v438 = vunpack.c.l.b16 %v345
    %v439 = vunpack.c.h.b16 %v345
    %v440 = vunpack.c.l.b16 %v346
    %v441 = vunpack.c.h.b16 %v346
    %v442 = vunpack.c.l.b16 %v347
    %v443 = vunpack.c.h.b16 %v347
    %v444 = vunpack.c.l.b16 %v348
    %v445 = vunpack.c.h.b16 %v348
    %v446 = vunpack.c.l.b16 %v349
    %v447 = vunpack.c.h.b16 %v349
    %v448 = vunpack.c.l.b16 %v350
    %v449 = vunpack.c.h.b16 %v350
    %v450 = vunpack.c.l.b16 %v351
    %v451 = vunpack.c.h.b16 %v351
    %v452 = vunpack.c.l.b16 %v352
    %v453 = vunpack.c.h.b16 %v352
    %v454 = vunpack.c.l.b16 %v353
    %v455 = vunpack.c.h.b16 %v353
    %v456 = vunpack.c.l.b16 %v354
    %v457 = vunpack.c.h.b16 %v354
    %v458 = vunpack.c.l.b16 %v355
    %v459 = vunpack.c.h.b16 %v355
    %v460 = vunpack.c.l.b16 %v356
    %v461 = vunpack.c.h.b16 %v356
    %v462 = vunpack.c.l.b16 %v357
    %v463 = vunpack.c.h.b16 %v357
    %v464 = vunpack.c.l.b16 %v358
    %v465 = vunpack.c.h.b16 %v358
    %v466 = vunpack.c.l.b16 %v359
    %v467 = vunpack.c.h.b16 %v359
    %v468 = vunpack.c.l.b16 %v360
    %v469 = vunpack.c.h.b16 %v360
    %v470 = vpack.c.b16 %v408, %v406
    %v471 = vpack.c.b16 %v409, %v407
    %v472 = vpack.c.b16 %v412, %v410
    %v473 = vpack.c.b16 %v413, %v411
    %v474 = vpack.c.b16 %v416, %v414
    %v475 = vpack.c.b16 %v417, %v415
    %v476 = vpack.c.b16 %v420, %v418
    %v477 = vpack.c.b16 %v421, %v419
    %v478 = vpack.c.b16 %v424, %v422
    %v479 = vpack.c.b16 %v425, %v423
    %v480 = vpack.c.b16 %v428, %v426
    %v481 = vpack.c.b16 %v429, %v427
    %v482 = vpack.c.b16 %v432, %v430
    %v483 = vpack.c.b16 %v433, %v431
    %v484 = vpack.c.b16 %v436, %v434
    %v485 = vpack.c.b16 %v437, %v435
    %v486 = vpack.c.b16 %v440, %v438
    %v487 = vpack.c.b16 %v441, %v439
    %v488 = vpack.c.b16 %v444, %v442
    %v489 = vpack.c.b16 %v445, %v443
    %v490 = vpack.c.b16 %v448, %v446
    %v491 = vpack.c.b16 %v449, %v447
    %v492 = vpack.c.b16 %v452, %v450
    %v493 = vpack.c.b16 %v453, %v451
    %v494 = vpack.c.b16 %v456, %v454
    %v495 = vpack.c.b16 %v457, %v455
    %v496 = vpack.c.b16 %v460, %v458
    %v497 = vpack.c.b16 %v461, %v459
    %v498 = vpack.c.b16 %v464, %v462
    %v499 = vpack.c.b16 %v465, %v463
    %v500 = vpack.c.b16 %v468, %v466
    %v501 = vpack.c.b16 %v469, %v467
    %534 = vmatprep.subr.bf16.mxu0 %v485
    %535 = vmatpush1.bf16.msra.mxu0 %v484
    %536 = vmatprep.subr.bf16.mxu0 %v483
    %537 = vmatpush1.bf16.msra.mxu0 %v482
    %538 = vmatprep.subr.bf16.mxu0 %v481
    %539 = vmatpush1.bf16.msra.mxu0 %v480
    %540 = vmatprep.subr.bf16.mxu0 %v479
    %541 = vmatpush1.bf16.msra.mxu0 %v478
    %542 = vmatprep.subr.bf16.mxu0 %v477
    %543 = vmatpush1.bf16.msra.mxu0 %v476
    %544 = vmatprep.subr.bf16.mxu0 %v475
    %545 = vmatpush1.bf16.msra.mxu0 %v474
    %546 = vmatprep.subr.bf16.mxu0 %v473
    %547 = vmatpush1.bf16.msra.mxu0 %v472
    %548 = vmatprep.subr.bf16.mxu0 %v471
    %549 = vmatpush1.bf16.msra.mxu0 %v470
    %550 = vmatprep.subr.bf16.mxu0 %v501
    %551 = vmatpush2.bf16.msra.mxu0 %v500
    %552 = vmatprep.subr.bf16.mxu0 %v499
    %553 = vmatpush2.bf16.msra.mxu0 %v498
    %554 = vmatprep.subr.bf16.mxu0 %v497
    %555 = vmatpush2.bf16.msra.mxu0 %v496
    %556 = vmatprep.subr.bf16.mxu0 %v495
    %557 = vmatpush2.bf16.msra.mxu0 %v494
    %558 = vmatprep.subr.bf16.mxu0 %v493
    %559 = vmatpush2.bf16.msra.mxu0 %v492
    %560 = vmatprep.subr.bf16.mxu0 %v491
    %561 = vmatpush2.bf16.msra.mxu0 %v490
    %562 = vmatprep.subr.bf16.mxu0 %v489
    %563 = vmatpush2.bf16.msra.mxu0 %v488
    %564 = vmatprep.subr.bf16.mxu0 %v487
    %565 = vmatpush2.bf16.msra.mxu0 %v486
    %566 = vmatprep.mubr.bf16.mxu0 %v327
    %567 = vmatmul.mubr.bf16.gmra.mxu0 %v326
    %v568 = vpop.f32.mrf.mxu0
    %v569 = vadd.f32 %v367, %v568
    %v570 = vpop.f32.mrf.mxu0
    %v571 = vadd.f32 %v371, %v570
    %v572 = vpop.f32.mrf.mxu0
    %v573 = vpop.f32.mrf.mxu0
    %574 = vdwg.mxu0
    %v575 = vmax.f32 %v569, 0.0
    %v576 = vmax.f32 %v571, 0.0
    %v577 = vpack.c.bf16 %v575, %v575
    %v578 = vpack.c.bf16 %v576, %v576
    %v579 = vld [vmem:[#allocation8] sm:$0xf]
    %v580 = vld [vmem:[#allocation8 + $0x4] sm:$0xf]
    %v581 = vld [vmem:[#allocation8 + $0x8] sm:$0xf]
    %v582 = vld [vmem:[#allocation8 + $0xc] sm:$0xf]
    %v583 = vld [vmem:[#allocation8 + $0x10] sm:$0xf]
    %v584 = vld [vmem:[#allocation8 + $0x14] sm:$0xf]
    %v585 = vld [vmem:[#allocation8 + $0x18] sm:$0xf]
    %v586 = vld [vmem:[#allocation8 + $0x1c] sm:$0xf]
    %v587 = vld [vmem:[#allocation8 + $0x20] sm:$0xf]
    %v588 = vld [vmem:[#allocation8 + $0x24] sm:$0xf]
    %v589 = vld [vmem:[#allocation8 + $0x28] sm:$0xf]
    %v590 = vld [vmem:[#allocation8 + $0x2c] sm:$0xf]
    %v591 = vld [vmem:[#allocation8 + $0x30] sm:$0xf]
    %v592 = vld [vmem:[#allocation8 + $0x34] sm:$0xf]
    %v593 = vld [vmem:[#allocation8 + $0x38] sm:$0xf]
    %v594 = vld [vmem:[#allocation8 + $0x3c] sm:$0xf]
    %v595 = vld [vmem:[#allocation8 + $0x40] sm:$0xf]
    %v596 = vld [vmem:[#allocation8 + $0x44] sm:$0xf]
    %v597 = vld [vmem:[#allocation8 + $0x48] sm:$0xf]
    %v598 = vld [vmem:[#allocation8 + $0x4c] sm:$0xf]
    %v599 = vld [vmem:[#allocation8 + $0x50] sm:$0xf]
    %v600 = vld [vmem:[#allocation8 + $0x54] sm:$0xf]
    %v601 = vld [vmem:[#allocation8 + $0x58] sm:$0xf]
    %v602 = vld [vmem:[#allocation8 + $0x5c] sm:$0xf]
    %v603 = vld [vmem:[#allocation8 + $0x60] sm:$0xf]
    %v604 = vld [vmem:[#allocation8 + $0x64] sm:$0xf]
    %v605 = vld [vmem:[#allocation8 + $0x68] sm:$0xf]
    %v606 = vld [vmem:[#allocation8 + $0x6c] sm:$0xf]
    %v607 = vld [vmem:[#allocation8 + $0x70] sm:$0xf]
    %v608 = vld [vmem:[#allocation8 + $0x74] sm:$0xf]
    %v609 = vld [vmem:[#allocation8 + $0x78] sm:$0xf]
    %v610 = vld [vmem:[#allocation8 + $0x7c] sm:$0xf]
    %v611 = vld [vmem:[%s4] sm:$0x1]
    %v613 = vlaneseq
    %v614 = vshrl.u32 %v613, 7
    %v615 = vsub.s32 0, %v614
    %v616 = vrot.slane %v611, %v615
    %v650 = vunpack.c.l.b16 %v579
    %v651 = vunpack.c.l.b16 %v580
    %v652 = vunpack.c.l.b16 %v581
    %v653 = vunpack.c.l.b16 %v582
    %v654 = vunpack.c.l.b16 %v583
    %v655 = vunpack.c.l.b16 %v584
    %v656 = vunpack.c.l.b16 %v585
    %v657 = vunpack.c.l.b16 %v586
    %v658 = vunpack.c.l.b16 %v587
    %v659 = vunpack.c.l.b16 %v588
    %v660 = vunpack.c.l.b16 %v589
    %v661 = vunpack.c.l.b16 %v590
    %v662 = vunpack.c.l.b16 %v591
    %v663 = vunpack.c.l.b16 %v592
    %v664 = vunpack.c.l.b16 %v593
    %v665 = vunpack.c.l.b16 %v594
    %v666 = vunpack.c.l.b16 %v595
    %v667 = vunpack.c.l.b16 %v596
    %v668 = vunpack.c.l.b16 %v597
    %v669 = vunpack.c.l.b16 %v598
    %v670 = vunpack.c.l.b16 %v599
    %v671 = vunpack.c.l.b16 %v600
    %v672 = vunpack.c.l.b16 %v601
    %v673 = vunpack.c.l.b16 %v602
    %v674 = vunpack.c.l.b16 %v603
    %v675 = vunpack.c.l.b16 %v604
    %v676 = vunpack.c.l.b16 %v605
    %v677 = vunpack.c.l.b16 %v606
    %v678 = vunpack.c.l.b16 %v607
    %v679 = vunpack.c.l.b16 %v608
    %v680 = vunpack.c.l.b16 %v609
    %v681 = vunpack.c.l.b16 %v610
    %v682 = vpack.c.b16 %v651, %v650
    %v683 = vpack.c.b16 %v653, %v652
    %v684 = vpack.c.b16 %v655, %v654
    %v685 = vpack.c.b16 %v657, %v656
    %v686 = vpack.c.b16 %v659, %v658
    %v687 = vpack.c.b16 %v661, %v660
    %v688 = vpack.c.b16 %v663, %v662
    %v689 = vpack.c.b16 %v665, %v664
    %v690 = vpack.c.b16 %v667, %v666
    %v691 = vpack.c.b16 %v669, %v668
    %v692 = vpack.c.b16 %v671, %v670
    %v693 = vpack.c.b16 %v673, %v672
    %v694 = vpack.c.b16 %v675, %v674
    %v695 = vpack.c.b16 %v677, %v676
    %v696 = vpack.c.b16 %v679, %v678
    %v697 = vpack.c.b16 %v681, %v680
    %714 = vmatprep.subr.bf16.mxu0 0
    %715 = vmatpush1.bf16.msra.mxu0 %v689
    %716 = vmatprep.subr.bf16.mxu0 0
    %717 = vmatpush1.bf16.msra.mxu0 %v688
    %718 = vmatprep.subr.bf16.mxu0 0
    %719 = vmatpush1.bf16.msra.mxu0 %v687
    %720 = vmatprep.subr.bf16.mxu0 0
    %721 = vmatpush1.bf16.msra.mxu0 %v686
    %722 = vmatprep.subr.bf16.mxu0 0
    %723 = vmatpush1.bf16.msra.mxu0 %v685
    %724 = vmatprep.subr.bf16.mxu0 0
    %725 = vmatpush1.bf16.msra.mxu0 %v684
    %726 = vmatprep.subr.bf16.mxu0 0
    %727 = vmatpush1.bf16.msra.mxu0 %v683
    %728 = vmatprep.subr.bf16.mxu0 0
    %729 = vmatpush1.bf16.msra.mxu0 %v682
    %730 = vmatprep.subr.bf16.mxu0 0
    %731 = vmatpush2.bf16.msra.mxu0 %v697
    %732 = vmatprep.subr.bf16.mxu0 0
    %733 = vmatpush2.bf16.msra.mxu0 %v696
    %734 = vmatprep.subr.bf16.mxu0 0
    %735 = vmatpush2.bf16.msra.mxu0 %v695
    %736 = vmatprep.subr.bf16.mxu0 0
    %737 = vmatpush2.bf16.msra.mxu0 %v694
    %738 = vmatprep.subr.bf16.mxu0 0
    %739 = vmatpush2.bf16.msra.mxu0 %v693
    %740 = vmatprep.subr.bf16.mxu0 0
    %741 = vmatpush2.bf16.msra.mxu0 %v692
    %742 = vmatprep.subr.bf16.mxu0 0
    %743 = vmatpush2.bf16.msra.mxu0 %v691
    %744 = vmatprep.subr.bf16.mxu0 0
    %745 = vmatpush2.bf16.msra.mxu0 %v690
    %746 = vmatprep.mubr.bf16.mxu0 %v578
    %747 = vmatmul.mubr.bf16.gmra.mxu0 %v577
    %v748 = vpop.f32.mrf.mxu0
    %v749 = vadd.f32 %v616, %v748
    %v750 = vpop.f32.mrf.mxu0
    %v751 = vpop.f32.mrf.mxu0
    %v752 = vpop.f32.mrf.mxu0
    %753 = vdwg.mxu0
    %754 = vmax.xlane.f32.xlu0 %v749
    %v755 = vpop.xlane.xlu0 %754
    %v756 = vsub.f32 %v749, %v755
    %v757 = vmul.f32 %v756, 1.442695
    %v758 = vpow.pop %v757
    %759 = vadd.xlane.f32.xlu0 %v758
    %v760 = vpop.xlane.xlu0 %759
    %v761 = vrcp.pop %v760
    %v762 = vmul.f32 %v758, %v761
    %763 = vst [vmem:[#allocation10] sm:$0xff] %v762
    // Predicated region
    $region38: #{_fused_forward.1} parent=1 // pred_check
      _
    $region39: #{_fused_forward.1} parent=1 // pred_check_branch
      %765 = sbr.rel (0) target = $region41
    $region40: #{_fused_forward.1} parent=1 // pred_region
      %s767 = ssub.s32 128, 128
      %768 = vsyncadd [#allocation4], %s767
      %s770 = sshll.u32 [#allocation10], 4
      %s771 = int_to_ptr.vmem [resolvable:$true] %s770
      %773 = dma.vmem_to_hbm [thread:$0]  %s771, 128, %s5, [#allocation4]
    $region41: #{_fused_forward.1} parent=1 // pred_fallthru
      _
    // Predicated region
    $region42: #{_fused_forward.1} parent=1 // pred_check
      _
    $region43: #{_fused_forward.1} parent=1 // pred_check_branch
      %775 = sbr.rel (0) target = $region45
    $region44: #{_fused_forward.1} parent=1 // pred_region
      %776 = dma.done [#allocation4], 128
    $region45: #{_fused_forward.1} parent=1 // pred_fallthru
      _
    %777 = vsyncpa [#allocation3], 1
    %778 = vsyncpa [#allocation6], 1
    %779 = vsyncpa [#allocation9], 1
    %780 = vsyncpa [#allocation4], 1

</llo_original>
